<compile_context>
chip_gen: v6e
topology: v6e:2x2x1
jax: 0.10.0
libtpu: 0.0.40
codegen_flags: <defaults>
</compile_context>

<pallas_src>
import functools

import jax
import jax.numpy as jnp
from jax.experimental import pallas as pl
from jax.experimental.pallas import tpu as pltpu

HIDDEN = 64
INPUT = 9
NUM_LAYERS = 2
OUTPUT = 10
OUT_PAD = 128  # lane-dense padded FC output width (sliced back to OUTPUT)


def _lstm_fc_kernel(x_ref, wih0_ref, whh0_ref, b0_ref,
                    wih1_ref, whh1_ref, b1_ref,
                    wfc_ref, bfc_ref,
                    out_ref,
                    h0_all_ref,
                    *, seq, bp):
    H = HIDDEN
    B = bp  # sublane-aligned (multiple of 8) padded batch

    def cell(gates, h, c):
        # Gate columns were permuted to (i, f, o, g) in the wrapper:
        # one contiguous 3H-wide sigmoid + one H-wide tanh per step.
        s = jax.nn.sigmoid(gates[:, :3 * H])
        i, f, o = s[:, 0 * H:1 * H], s[:, 1 * H:2 * H], s[:, 2 * H:3 * H]
        g = jnp.tanh(gates[:, 3 * H:])
        c_new = f * c + i * g
        h_new = o * jnp.tanh(c_new)
        return h_new, c_new

    # ---- layer 0: input projection hoisted over the whole sequence ----
    # x_ref is time-major flattened (row = t*B + b); bias folded in here.
    g0_all = (jnp.dot(x_ref[...], wih0_ref[...],
                      preferred_element_type=jnp.float32) + b0_ref[...])

    whh0 = whh0_ref[...]
    h = jnp.zeros((B, H), jnp.float32)
    c = jnp.zeros((B, H), jnp.float32)
    for t in range(seq):  # static, fully unrolled; only h @ W_hh is serial
        gates = g0_all[t * B:(t + 1) * B, :] + jnp.dot(
            h, whh0, preferred_element_type=jnp.float32)
        h, c = cell(gates, h, c)
        # Sublane-aligned full-tile store of layer-0 outputs (time-major).
        h0_all_ref[t * B:(t + 1) * B, :] = h

    # ---- layer 1: input projection hoisted over all layer-0 outputs ----
    g1_all = (jnp.dot(h0_all_ref[...], wih1_ref[...],
                      preferred_element_type=jnp.float32) + b1_ref[...])

    whh1 = whh1_ref[...]
    h = jnp.zeros((B, H), jnp.float32)
    c = jnp.zeros((B, H), jnp.float32)
    for t in range(seq):
        gates = g1_all[t * B:(t + 1) * B, :] + jnp.dot(
            h, whh1, preferred_element_type=jnp.float32)
        h, c = cell(gates, h, c)

    # ---- fused FC on the last timestep (lane- and sublane-aligned store) ----
    out_ref[...] = (jnp.dot(h, wfc_ref[...],
                            preferred_element_type=jnp.float32) + bfc_ref[...])


def simple_rnn_forward(x, params):
    """x: (batch, seq, INPUT) float32 -> (batch, OUTPUT) float32."""
    (w_ih0, w_hh0, b_ih0, b_hh0,
     w_ih1, w_hh1, b_ih1, b_hh1,
     w_fc, b_fc) = params
    batch, seq, _ = x.shape
    H = HIDDEN
    bp = ((batch + 7) // 8) * 8  # pad batch to sublane multiple

    # Permute torch gate blocks (i, f, g, o) -> (i, f, o, g) so all sigmoid
    # gates are contiguous inside the kernel.
    perm = jnp.concatenate([jnp.arange(0, H), jnp.arange(H, 2 * H),
                            jnp.arange(3 * H, 4 * H), jnp.arange(2 * H, 3 * H)])

    def prep(w_ih, w_hh, b_ih, b_hh):
        return (jnp.transpose(w_ih[perm, :]),   # (in_features, 4H)
                jnp.transpose(w_hh[perm, :]),   # (H, 4H)
                (b_ih + b_hh)[perm][None, :])   # (1, 4H) folded bias

    wih0_k, whh0_k, b0_k = prep(w_ih0, w_hh0, b_ih0, b_hh0)
    wih1_k, whh1_k, b1_k = prep(w_ih1, w_hh1, b_ih1, b_hh1)

    # Lane-dense FC output: pad OUTPUT (10) up to 128 cols, slice back afterwards.
    wfc_k = jnp.zeros((H, OUT_PAD), jnp.float32).at[:, :OUTPUT].set(jnp.transpose(w_fc))
    bfc_k = jnp.zeros((1, OUT_PAD), jnp.float32).at[0, :OUTPUT].set(b_fc)

    # Time-major, batch zero-padded to bp, flattened (row = t*bp + b) so every
    # timestep is a contiguous, sublane-aligned 2-D slice inside the kernel
    # (one tiny one-off XLA transpose/pad outside the kernel).
    x_tm = jnp.transpose(x, (1, 0, 2))                       # (seq, batch, INPUT)
    x_tm = jnp.pad(x_tm, ((0, 0), (0, bp - batch), (0, 0)))  # (seq, bp, INPUT)
    x_tm = x_tm.reshape(seq * bp, INPUT)

    args = (x_tm, wih0_k, whh0_k, b0_k, wih1_k, whh1_k, b1_k, wfc_k, bfc_k)
    full = lambda a: pl.BlockSpec(a.shape, lambda i: (0,) * a.ndim)

    grid_spec = pltpu.PrefetchScalarGridSpec(
        num_scalar_prefetch=0,
        grid=(1,),  # single grid step: whole recurrence runs in-kernel
        in_specs=[full(a) for a in args],
        out_specs=pl.BlockSpec((bp, OUT_PAD), lambda i: (0, 0)),
        scratch_shapes=[pltpu.VMEM((seq * bp, HIDDEN), jnp.float32)],
    )

    out = pl.pallas_call(
        functools.partial(_lstm_fc_kernel, seq=seq, bp=bp),
        out_shape=jax.ShapeDtypeStruct((bp, OUT_PAD), jnp.float32),
        grid_spec=grid_spec,
        compiler_params=pltpu.CompilerParams(
            dimension_semantics=("arbitrary",)),
    )(*args)
    return out[:batch, :OUTPUT]


def _ref_forward(x, params):
    """Pure-JAX reference matching nn.LSTM(batch_first, 2 layers) + nn.Linear."""
    (w_ih0, w_hh0, b_ih0, b_hh0,
     w_ih1, w_hh1, b_ih1, b_hh1,
     w_fc, b_fc) = params
    H = HIDDEN
    batch = x.shape[0]

    def cell(h, c, x_t, w_ih, w_hh, b_ih, b_hh):
        g = x_t @ w_ih.T + h @ w_hh.T + b_ih + b_hh
        i = jax.nn.sigmoid(g[:, 0 * H:1 * H])
        f = jax.nn.sigmoid(g[:, 1 * H:2 * H])
        gg = jnp.tanh(g[:, 2 * H:3 * H])
        o = jax.nn.sigmoid(g[:, 3 * H:4 * H])
        c_new = f * c + i * gg
        h_new = o * jnp.tanh(c_new)
        return h_new, c_new

    h0 = jnp.zeros((batch, H), jnp.float32)
    c0 = jnp.zeros_like(h0)
    h1 = jnp.zeros_like(h0)
    c1 = jnp.zeros_like(h0)
    for t in range(x.shape[1]):
        h0, c0 = cell(h0, c0, x[:, t, :], w_ih0, w_hh0, b_ih0, b_hh0)
        h1, c1 = cell(h1, c1, h0, w_ih1, w_hh1, b_ih1, b_hh1)
    return h1 @ w_fc.T + b_fc


def _init_params(key):
    # Deterministic synthetic init, mimicking torch's U(-1/sqrt(H), 1/sqrt(H)),
    # in PyTorch parameter layout (w: (4H, in), gate order i, f, g, o).
    s = 1.0 / (HIDDEN ** 0.5)
    ks = jax.random.split(key, 10)
    u = lambda k, shape: jax.random.uniform(k, shape, jnp.float32, -s, s)
    w_ih0 = u(ks[0], (4 * HIDDEN, INPUT))
    w_hh0 = u(ks[1], (4 * HIDDEN, HIDDEN))
    b_ih0 = u(ks[2], (4 * HIDDEN,))
    b_hh0 = u(ks[3], (4 * HIDDEN,))
    w_ih1 = u(ks[4], (4 * HIDDEN, HIDDEN))
    w_hh1 = u(ks[5], (4 * HIDDEN, HIDDEN))
    b_ih1 = u(ks[6], (4 * HIDDEN,))
    b_hh1 = u(ks[7], (4 * HIDDEN,))
    w_fc = u(ks[8], (OUTPUT, HIDDEN))
    b_fc = u(ks[9], (OUTPUT,))
    return (w_ih0, w_hh0, b_ih0, b_hh0,
            w_ih1, w_hh1, b_ih1, b_hh1,
            w_fc, b_fc)


if __name__ == "__main__":
    key = jax.random.PRNGKey(0)
    k_x, k_p = jax.random.split(key)

    batch, seq = 2, 8
    x = jax.random.normal(k_x, (batch, seq, INPUT), jnp.float32)
    params = _init_params(k_p)

    out = simple_rnn_forward(x, params)
    out = jax.block_until_ready(out)

    ref = _ref_forward(x, params)
    assert out.shape == (batch, OUTPUT)
    assert jnp.allclose(out, ref, rtol=1e-4, atol=1e-4), "mismatch vs reference"

    print("KERNEL_OK")
</pallas_src>

<mosaic_0001>
module attributes {stable_mosaic.version = 11 : i64} {
  func.func @_lstm_fc_kernel(%arg0: i32, %arg1: memref<64x9xf32, #tpu.memory_space<vmem>>, %arg2: memref<9x256xf32, #tpu.memory_space<vmem>>, %arg3: memref<64x256xf32, #tpu.memory_space<vmem>>, %arg4: memref<1x256xf32, #tpu.memory_space<vmem>>, %arg5: memref<64x256xf32, #tpu.memory_space<vmem>>, %arg6: memref<64x256xf32, #tpu.memory_space<vmem>>, %arg7: memref<1x256xf32, #tpu.memory_space<vmem>>, %arg8: memref<64x128xf32, #tpu.memory_space<vmem>>, %arg9: memref<1x128xf32, #tpu.memory_space<vmem>>, %arg10: memref<8x128xf32, #tpu.memory_space<vmem>>, %arg11: memref<64x64xf32, #tpu.memory_space<vmem>>) attributes {dimension_semantics = [#tpu.dimension_semantics<arbitrary>], iteration_bounds = array<i64: 1>, scalar_prefetch = 0 : i64, scratch_operands = 1 : i64, tpu.core_type = #tpu.core_type<tc>, window_params = [{pipeline_mode = #tpu.pipeline_mode<synchronous>, transform_indices = @transform_0, window_bounds = array<i64: 64, 9>}, {pipeline_mode = #tpu.pipeline_mode<synchronous>, transform_indices = @transform_1, window_bounds = array<i64: 9, 256>}, {pipeline_mode = #tpu.pipeline_mode<synchronous>, transform_indices = @transform_2, window_bounds = array<i64: 64, 256>}, {pipeline_mode = #tpu.pipeline_mode<synchronous>, transform_indices = @transform_3, window_bounds = array<i64: 1, 256>}, {pipeline_mode = #tpu.pipeline_mode<synchronous>, transform_indices = @transform_4, window_bounds = array<i64: 64, 256>}, {pipeline_mode = #tpu.pipeline_mode<synchronous>, transform_indices = @transform_5, window_bounds = array<i64: 64, 256>}, {pipeline_mode = #tpu.pipeline_mode<synchronous>, transform_indices = @transform_6, window_bounds = array<i64: 1, 256>}, {pipeline_mode = #tpu.pipeline_mode<synchronous>, transform_indices = @transform_7, window_bounds = array<i64: 64, 128>}, {pipeline_mode = #tpu.pipeline_mode<synchronous>, transform_indices = @transform_8, window_bounds = array<i64: 1, 128>}, {pipeline_mode = #tpu.pipeline_mode<synchronous>, transform_indices = @transform_9, window_bounds = array<i64: 8, 128>}]} {
    %c0 = arith.constant 0 : index
    %c0_0 = arith.constant 0 : index
    %0 = vector.load %arg1[%c0, %c0_0] : memref<64x9xf32, #tpu.memory_space<vmem>>, vector<64x9xf32>
    %c0_1 = arith.constant 0 : index
    %c0_2 = arith.constant 0 : index
    %1 = vector.load %arg2[%c0_1, %c0_2] : memref<9x256xf32, #tpu.memory_space<vmem>>, vector<9x256xf32>
    %cst = arith.constant dense<0.000000e+00> : vector<64x256xf32>
    %2 = tpu.matmul %0, %1, %cst {dimension_numbers = #tpu.dot_dimension_numbers<[1], [0], [0], [1], [0, 0, 1, 1], [], []>} : vector<64x9xf32>, vector<9x256xf32>, vector<64x256xf32> -> vector<64x256xf32>
    %c0_3 = arith.constant 0 : index
    %c0_4 = arith.constant 0 : index
    %3 = vector.load %arg4[%c0_3, %c0_4] : memref<1x256xf32, #tpu.memory_space<vmem>>, vector<1x256xf32>
    %4 = vector.broadcast %3 : vector<1x256xf32> to vector<64x256xf32>
    %5 = arith.addf %2, %4 : vector<64x256xf32>
    %c0_5 = arith.constant 0 : index
    %c0_6 = arith.constant 0 : index
    %6 = vector.load %arg3[%c0_5, %c0_6] : memref<64x256xf32, #tpu.memory_space<vmem>>, vector<64x256xf32>
    %cst_7 = arith.constant 0.000000e+00 : f32
    %7 = vector.broadcast %cst_7 : f32 to vector<8x64xf32>
    %cst_8 = arith.constant 0.000000e+00 : f32
    %8 = vector.broadcast %cst_8 : f32 to vector<8x64xf32>
    %9 = vector.extract_strided_slice %5 {offsets = [0, 0], sizes = [8, 256], strides = [1, 1]} : vector<64x256xf32> to vector<8x256xf32>
    %cst_9 = arith.constant dense<0.000000e+00> : vector<8x256xf32>
    %10 = tpu.matmul %7, %6, %cst_9 {dimension_numbers = #tpu.dot_dimension_numbers<[1], [0], [0], [1], [0, 0, 1, 1], [], []>} : vector<8x64xf32>, vector<64x256xf32>, vector<8x256xf32> -> vector<8x256xf32>
    %11 = arith.addf %9, %10 : vector<8x256xf32>
    %12 = vector.extract_strided_slice %11 {offsets = [0, 0], sizes = [8, 192], strides = [1, 1]} : vector<8x256xf32> to vector<8x192xf32>
    %13 = arith.negf %12 : vector<8x192xf32>
    %14 = math.exp %13 : vector<8x192xf32>
    %cst_10 = arith.constant 1.000000e+00 : f32
    %15 = vector.broadcast %cst_10 : f32 to vector<8x192xf32>
    %16 = arith.addf %15, %14 : vector<8x192xf32>
    %17 = arith.divf %15, %16 : vector<8x192xf32>
    %18 = vector.extract_strided_slice %17 {offsets = [0, 0], sizes = [8, 64], strides = [1, 1]} : vector<8x192xf32> to vector<8x64xf32>
    %19 = vector.extract_strided_slice %17 {offsets = [0, 64], sizes = [8, 64], strides = [1, 1]} : vector<8x192xf32> to vector<8x64xf32>
    %20 = vector.extract_strided_slice %17 {offsets = [0, 128], sizes = [8, 64], strides = [1, 1]} : vector<8x192xf32> to vector<8x64xf32>
    %21 = vector.extract_strided_slice %11 {offsets = [0, 192], sizes = [8, 64], strides = [1, 1]} : vector<8x256xf32> to vector<8x64xf32>
    %22 = math.tanh %21 : vector<8x64xf32>
    %23 = arith.mulf %19, %8 : vector<8x64xf32>
    %24 = arith.mulf %18, %22 : vector<8x64xf32>
    %25 = arith.addf %23, %24 : vector<8x64xf32>
    %26 = math.tanh %25 : vector<8x64xf32>
    %27 = arith.mulf %20, %26 : vector<8x64xf32>
    %c0_11 = arith.constant 0 : index
    %c0_12 = arith.constant 0 : index
    %28 = vector.load %arg11[%c0_11, %c0_12] : memref<64x64xf32, #tpu.memory_space<vmem>>, vector<8x64xf32>
    tpu.vector_store %arg11[%c0_11, %c0_12], %27 {strides = array<i32>} : memref<64x64xf32, #tpu.memory_space<vmem>>, vector<8x64xf32>,
    %29 = vector.extract_strided_slice %5 {offsets = [8, 0], sizes = [8, 256], strides = [1, 1]} : vector<64x256xf32> to vector<8x256xf32>
    %cst_13 = arith.constant dense<0.000000e+00> : vector<8x256xf32>
    %30 = tpu.matmul %27, %6, %cst_13 {dimension_numbers = #tpu.dot_dimension_numbers<[1], [0], [0], [1], [0, 0, 1, 1], [], []>} : vector<8x64xf32>, vector<64x256xf32>, vector<8x256xf32> -> vector<8x256xf32>
    %31 = arith.addf %29, %30 : vector<8x256xf32>
    %32 = vector.extract_strided_slice %31 {offsets = [0, 0], sizes = [8, 192], strides = [1, 1]} : vector<8x256xf32> to vector<8x192xf32>
    %33 = arith.negf %32 : vector<8x192xf32>
    %34 = math.exp %33 : vector<8x192xf32>
    %cst_14 = arith.constant 1.000000e+00 : f32
    %35 = vector.broadcast %cst_14 : f32 to vector<8x192xf32>
    %36 = arith.addf %35, %34 : vector<8x192xf32>
    %37 = arith.divf %35, %36 : vector<8x192xf32>
    %38 = vector.extract_strided_slice %37 {offsets = [0, 0], sizes = [8, 64], strides = [1, 1]} : vector<8x192xf32> to vector<8x64xf32>
    %39 = vector.extract_strided_slice %37 {offsets = [0, 64], sizes = [8, 64], strides = [1, 1]} : vector<8x192xf32> to vector<8x64xf32>
    %40 = vector.extract_strided_slice %37 {offsets = [0, 128], sizes = [8, 64], strides = [1, 1]} : vector<8x192xf32> to vector<8x64xf32>
    %41 = vector.extract_strided_slice %31 {offsets = [0, 192], sizes = [8, 64], strides = [1, 1]} : vector<8x256xf32> to vector<8x64xf32>
    %42 = math.tanh %41 : vector<8x64xf32>
    %43 = arith.mulf %39, %25 : vector<8x64xf32>
    %44 = arith.mulf %38, %42 : vector<8x64xf32>
    %45 = arith.addf %43, %44 : vector<8x64xf32>
    %46 = math.tanh %45 : vector<8x64xf32>
    %47 = arith.mulf %40, %46 : vector<8x64xf32>
    %c8 = arith.constant 8 : index
    %c0_15 = arith.constant 0 : index
    %48 = vector.load %arg11[%c8, %c0_15] : memref<64x64xf32, #tpu.memory_space<vmem>>, vector<8x64xf32>
    tpu.vector_store %arg11[%c8, %c0_15], %47 {strides = array<i32>} : memref<64x64xf32, #tpu.memory_space<vmem>>, vector<8x64xf32>,
    %49 = vector.extract_strided_slice %5 {offsets = [16, 0], sizes = [8, 256], strides = [1, 1]} : vector<64x256xf32> to vector<8x256xf32>
    %cst_16 = arith.constant dense<0.000000e+00> : vector<8x256xf32>
    %50 = tpu.matmul %47, %6, %cst_16 {dimension_numbers = #tpu.dot_dimension_numbers<[1], [0], [0], [1], [0, 0, 1, 1], [], []>} : vector<8x64xf32>, vector<64x256xf32>, vector<8x256xf32> -> vector<8x256xf32>
    %51 = arith.addf %49, %50 : vector<8x256xf32>
    %52 = vector.extract_strided_slice %51 {offsets = [0, 0], sizes = [8, 192], strides = [1, 1]} : vector<8x256xf32> to vector<8x192xf32>
    %53 = arith.negf %52 : vector<8x192xf32>
    %54 = math.exp %53 : vector<8x192xf32>
    %cst_17 = arith.constant 1.000000e+00 : f32
    %55 = vector.broadcast %cst_17 : f32 to vector<8x192xf32>
    %56 = arith.addf %55, %54 : vector<8x192xf32>
    %57 = arith.divf %55, %56 : vector<8x192xf32>
    %58 = vector.extract_strided_slice %57 {offsets = [0, 0], sizes = [8, 64], strides = [1, 1]} : vector<8x192xf32> to vector<8x64xf32>
    %59 = vector.extract_strided_slice %57 {offsets = [0, 64], sizes = [8, 64], strides = [1, 1]} : vector<8x192xf32> to vector<8x64xf32>
    %60 = vector.extract_strided_slice %57 {offsets = [0, 128], sizes = [8, 64], strides = [1, 1]} : vector<8x192xf32> to vector<8x64xf32>
    %61 = vector.extract_strided_slice %51 {offsets = [0, 192], sizes = [8, 64], strides = [1, 1]} : vector<8x256xf32> to vector<8x64xf32>
    %62 = math.tanh %61 : vector<8x64xf32>
    %63 = arith.mulf %59, %45 : vector<8x64xf32>
    %64 = arith.mulf %58, %62 : vector<8x64xf32>
    %65 = arith.addf %63, %64 : vector<8x64xf32>
    %66 = math.tanh %65 : vector<8x64xf32>
    %67 = arith.mulf %60, %66 : vector<8x64xf32>
    %c16 = arith.constant 16 : index
    %c0_18 = arith.constant 0 : index
    %68 = vector.load %arg11[%c16, %c0_18] : memref<64x64xf32, #tpu.memory_space<vmem>>, vector<8x64xf32>
    tpu.vector_store %arg11[%c16, %c0_18], %67 {strides = array<i32>} : memref<64x64xf32, #tpu.memory_space<vmem>>, vector<8x64xf32>,
    %69 = vector.extract_strided_slice %5 {offsets = [24, 0], sizes = [8, 256], strides = [1, 1]} : vector<64x256xf32> to vector<8x256xf32>
    %cst_19 = arith.constant dense<0.000000e+00> : vector<8x256xf32>
    %70 = tpu.matmul %67, %6, %cst_19 {dimension_numbers = #tpu.dot_dimension_numbers<[1], [0], [0], [1], [0, 0, 1, 1], [], []>} : vector<8x64xf32>, vector<64x256xf32>, vector<8x256xf32> -> vector<8x256xf32>
    %71 = arith.addf %69, %70 : vector<8x256xf32>
    %72 = vector.extract_strided_slice %71 {offsets = [0, 0], sizes = [8, 192], strides = [1, 1]} : vector<8x256xf32> to vector<8x192xf32>
    %73 = arith.negf %72 : vector<8x192xf32>
    %74 = math.exp %73 : vector<8x192xf32>
    %cst_20 = arith.constant 1.000000e+00 : f32
    %75 = vector.broadcast %cst_20 : f32 to vector<8x192xf32>
    %76 = arith.addf %75, %74 : vector<8x192xf32>
    %77 = arith.divf %75, %76 : vector<8x192xf32>
    %78 = vector.extract_strided_slice %77 {offsets = [0, 0], sizes = [8, 64], strides = [1, 1]} : vector<8x192xf32> to vector<8x64xf32>
    %79 = vector.extract_strided_slice %77 {offsets = [0, 64], sizes = [8, 64], strides = [1, 1]} : vector<8x192xf32> to vector<8x64xf32>
    %80 = vector.extract_strided_slice %77 {offsets = [0, 128], sizes = [8, 64], strides = [1, 1]} : vector<8x192xf32> to vector<8x64xf32>
    %81 = vector.extract_strided_slice %71 {offsets = [0, 192], sizes = [8, 64], strides = [1, 1]} : vector<8x256xf32> to vector<8x64xf32>
    %82 = math.tanh %81 : vector<8x64xf32>
    %83 = arith.mulf %79, %65 : vector<8x64xf32>
    %84 = arith.mulf %78, %82 : vector<8x64xf32>
    %85 = arith.addf %83, %84 : vector<8x64xf32>
    %86 = math.tanh %85 : vector<8x64xf32>
    %87 = arith.mulf %80, %86 : vector<8x64xf32>
    %c24 = arith.constant 24 : index
    %c0_21 = arith.constant 0 : index
    %88 = vector.load %arg11[%c24, %c0_21] : memref<64x64xf32, #tpu.memory_space<vmem>>, vector<8x64xf32>
    tpu.vector_store %arg11[%c24, %c0_21], %87 {strides = array<i32>} : memref<64x64xf32, #tpu.memory_space<vmem>>, vector<8x64xf32>,
    %89 = vector.extract_strided_slice %5 {offsets = [32, 0], sizes = [8, 256], strides = [1, 1]} : vector<64x256xf32> to vector<8x256xf32>
    %cst_22 = arith.constant dense<0.000000e+00> : vector<8x256xf32>
    %90 = tpu.matmul %87, %6, %cst_22 {dimension_numbers = #tpu.dot_dimension_numbers<[1], [0], [0], [1], [0, 0, 1, 1], [], []>} : vector<8x64xf32>, vector<64x256xf32>, vector<8x256xf32> -> vector<8x256xf32>
    %91 = arith.addf %89, %90 : vector<8x256xf32>
    %92 = vector.extract_strided_slice %91 {offsets = [0, 0], sizes = [8, 192], strides = [1, 1]} : vector<8x256xf32> to vector<8x192xf32>
    %93 = arith.negf %92 : vector<8x192xf32>
    %94 = math.exp %93 : vector<8x192xf32>
    %cst_23 = arith.constant 1.000000e+00 : f32
    %95 = vector.broadcast %cst_23 : f32 to vector<8x192xf32>
    %96 = arith.addf %95, %94 : vector<8x192xf32>
    %97 = arith.divf %95, %96 : vector<8x192xf32>
    %98 = vector.extract_strided_slice %97 {offsets = [0, 0], sizes = [8, 64], strides = [1, 1]} : vector<8x192xf32> to vector<8x64xf32>
    %99 = vector.extract_strided_slice %97 {offsets = [0, 64], sizes = [8, 64], strides = [1, 1]} : vector<8x192xf32> to vector<8x64xf32>
    %100 = vector.extract_strided_slice %97 {offsets = [0, 128], sizes = [8, 64], strides = [1, 1]} : vector<8x192xf32> to vector<8x64xf32>
    %101 = vector.extract_strided_slice %91 {offsets = [0, 192], sizes = [8, 64], strides = [1, 1]} : vector<8x256xf32> to vector<8x64xf32>
    %102 = math.tanh %101 : vector<8x64xf32>
    %103 = arith.mulf %99, %85 : vector<8x64xf32>
    %104 = arith.mulf %98, %102 : vector<8x64xf32>
    %105 = arith.addf %103, %104 : vector<8x64xf32>
    %106 = math.tanh %105 : vector<8x64xf32>
    %107 = arith.mulf %100, %106 : vector<8x64xf32>
    %c32 = arith.constant 32 : index
    %c0_24 = arith.constant 0 : index
    %108 = vector.load %arg11[%c32, %c0_24] : memref<64x64xf32, #tpu.memory_space<vmem>>, vector<8x64xf32>
    tpu.vector_store %arg11[%c32, %c0_24], %107 {strides = array<i32>} : memref<64x64xf32, #tpu.memory_space<vmem>>, vector<8x64xf32>,
    %109 = vector.extract_strided_slice %5 {offsets = [40, 0], sizes = [8, 256], strides = [1, 1]} : vector<64x256xf32> to vector<8x256xf32>
    %cst_25 = arith.constant dense<0.000000e+00> : vector<8x256xf32>
    %110 = tpu.matmul %107, %6, %cst_25 {dimension_numbers = #tpu.dot_dimension_numbers<[1], [0], [0], [1], [0, 0, 1, 1], [], []>} : vector<8x64xf32>, vector<64x256xf32>, vector<8x256xf32> -> vector<8x256xf32>
    %111 = arith.addf %109, %110 : vector<8x256xf32>
    %112 = vector.extract_strided_slice %111 {offsets = [0, 0], sizes = [8, 192], strides = [1, 1]} : vector<8x256xf32> to vector<8x192xf32>
    %113 = arith.negf %112 : vector<8x192xf32>
    %114 = math.exp %113 : vector<8x192xf32>
    %cst_26 = arith.constant 1.000000e+00 : f32
    %115 = vector.broadcast %cst_26 : f32 to vector<8x192xf32>
    %116 = arith.addf %115, %114 : vector<8x192xf32>
    %117 = arith.divf %115, %116 : vector<8x192xf32>
    %118 = vector.extract_strided_slice %117 {offsets = [0, 0], sizes = [8, 64], strides = [1, 1]} : vector<8x192xf32> to vector<8x64xf32>
    %119 = vector.extract_strided_slice %117 {offsets = [0, 64], sizes = [8, 64], strides = [1, 1]} : vector<8x192xf32> to vector<8x64xf32>
    %120 = vector.extract_strided_slice %117 {offsets = [0, 128], sizes = [8, 64], strides = [1, 1]} : vector<8x192xf32> to vector<8x64xf32>
    %121 = vector.extract_strided_slice %111 {offsets = [0, 192], sizes = [8, 64], strides = [1, 1]} : vector<8x256xf32> to vector<8x64xf32>
    %122 = math.tanh %121 : vector<8x64xf32>
    %123 = arith.mulf %119, %105 : vector<8x64xf32>
    %124 = arith.mulf %118, %122 : vector<8x64xf32>
    %125 = arith.addf %123, %124 : vector<8x64xf32>
    %126 = math.tanh %125 : vector<8x64xf32>
    %127 = arith.mulf %120, %126 : vector<8x64xf32>
    %c40 = arith.constant 40 : index
    %c0_27 = arith.constant 0 : index
    %128 = vector.load %arg11[%c40, %c0_27] : memref<64x64xf32, #tpu.memory_space<vmem>>, vector<8x64xf32>
    tpu.vector_store %arg11[%c40, %c0_27], %127 {strides = array<i32>} : memref<64x64xf32, #tpu.memory_space<vmem>>, vector<8x64xf32>,
    %129 = vector.extract_strided_slice %5 {offsets = [48, 0], sizes = [8, 256], strides = [1, 1]} : vector<64x256xf32> to vector<8x256xf32>
    %cst_28 = arith.constant dense<0.000000e+00> : vector<8x256xf32>
    %130 = tpu.matmul %127, %6, %cst_28 {dimension_numbers = #tpu.dot_dimension_numbers<[1], [0], [0], [1], [0, 0, 1, 1], [], []>} : vector<8x64xf32>, vector<64x256xf32>, vector<8x256xf32> -> vector<8x256xf32>
    %131 = arith.addf %129, %130 : vector<8x256xf32>
    %132 = vector.extract_strided_slice %131 {offsets = [0, 0], sizes = [8, 192], strides = [1, 1]} : vector<8x256xf32> to vector<8x192xf32>
    %133 = arith.negf %132 : vector<8x192xf32>
    %134 = math.exp %133 : vector<8x192xf32>
    %cst_29 = arith.constant 1.000000e+00 : f32
    %135 = vector.broadcast %cst_29 : f32 to vector<8x192xf32>
    %136 = arith.addf %135, %134 : vector<8x192xf32>
    %137 = arith.divf %135, %136 : vector<8x192xf32>
    %138 = vector.extract_strided_slice %137 {offsets = [0, 0], sizes = [8, 64], strides = [1, 1]} : vector<8x192xf32> to vector<8x64xf32>
    %139 = vector.extract_strided_slice %137 {offsets = [0, 64], sizes = [8, 64], strides = [1, 1]} : vector<8x192xf32> to vector<8x64xf32>
    %140 = vector.extract_strided_slice %137 {offsets = [0, 128], sizes = [8, 64], strides = [1, 1]} : vector<8x192xf32> to vector<8x64xf32>
    %141 = vector.extract_strided_slice %131 {offsets = [0, 192], sizes = [8, 64], strides = [1, 1]} : vector<8x256xf32> to vector<8x64xf32>
    %142 = math.tanh %141 : vector<8x64xf32>
    %143 = arith.mulf %139, %125 : vector<8x64xf32>
    %144 = arith.mulf %138, %142 : vector<8x64xf32>
    %145 = arith.addf %143, %144 : vector<8x64xf32>
    %146 = math.tanh %145 : vector<8x64xf32>
    %147 = arith.mulf %140, %146 : vector<8x64xf32>
    %c48 = arith.constant 48 : index
    %c0_30 = arith.constant 0 : index
    %148 = vector.load %arg11[%c48, %c0_30] : memref<64x64xf32, #tpu.memory_space<vmem>>, vector<8x64xf32>
    tpu.vector_store %arg11[%c48, %c0_30], %147 {strides = array<i32>} : memref<64x64xf32, #tpu.memory_space<vmem>>, vector<8x64xf32>,
    %149 = vector.extract_strided_slice %5 {offsets = [56, 0], sizes = [8, 256], strides = [1, 1]} : vector<64x256xf32> to vector<8x256xf32>
    %cst_31 = arith.constant dense<0.000000e+00> : vector<8x256xf32>
    %150 = tpu.matmul %147, %6, %cst_31 {dimension_numbers = #tpu.dot_dimension_numbers<[1], [0], [0], [1], [0, 0, 1, 1], [], []>} : vector<8x64xf32>, vector<64x256xf32>, vector<8x256xf32> -> vector<8x256xf32>
    %151 = arith.addf %149, %150 : vector<8x256xf32>
    %152 = vector.extract_strided_slice %151 {offsets = [0, 0], sizes = [8, 192], strides = [1, 1]} : vector<8x256xf32> to vector<8x192xf32>
    %153 = arith.negf %152 : vector<8x192xf32>
    %154 = math.exp %153 : vector<8x192xf32>
    %cst_32 = arith.constant 1.000000e+00 : f32
    %155 = vector.broadcast %cst_32 : f32 to vector<8x192xf32>
    %156 = arith.addf %155, %154 : vector<8x192xf32>
    %157 = arith.divf %155, %156 : vector<8x192xf32>
    %158 = vector.extract_strided_slice %157 {offsets = [0, 0], sizes = [8, 64], strides = [1, 1]} : vector<8x192xf32> to vector<8x64xf32>
    %159 = vector.extract_strided_slice %157 {offsets = [0, 64], sizes = [8, 64], strides = [1, 1]} : vector<8x192xf32> to vector<8x64xf32>
    %160 = vector.extract_strided_slice %157 {offsets = [0, 128], sizes = [8, 64], strides = [1, 1]} : vector<8x192xf32> to vector<8x64xf32>
    %161 = vector.extract_strided_slice %151 {offsets = [0, 192], sizes = [8, 64], strides = [1, 1]} : vector<8x256xf32> to vector<8x64xf32>
    %162 = math.tanh %161 : vector<8x64xf32>
    %163 = arith.mulf %159, %145 : vector<8x64xf32>
    %164 = arith.mulf %158, %162 : vector<8x64xf32>
    %165 = arith.addf %163, %164 : vector<8x64xf32>
    %166 = math.tanh %165 : vector<8x64xf32>
    %167 = arith.mulf %160, %166 : vector<8x64xf32>
    %c56 = arith.constant 56 : index
    %c0_33 = arith.constant 0 : index
    %168 = vector.load %arg11[%c56, %c0_33] : memref<64x64xf32, #tpu.memory_space<vmem>>, vector<8x64xf32>
    tpu.vector_store %arg11[%c56, %c0_33], %167 {strides = array<i32>} : memref<64x64xf32, #tpu.memory_space<vmem>>, vector<8x64xf32>,
    %c0_34 = arith.constant 0 : index
    %c0_35 = arith.constant 0 : index
    %169 = vector.load %arg11[%c0_34, %c0_35] : memref<64x64xf32, #tpu.memory_space<vmem>>, vector<64x64xf32>
    %c0_36 = arith.constant 0 : index
    %c0_37 = arith.constant 0 : index
    %170 = vector.load %arg5[%c0_36, %c0_37] : memref<64x256xf32, #tpu.memory_space<vmem>>, vector<64x256xf32>
    %cst_38 = arith.constant dense<0.000000e+00> : vector<64x256xf32>
    %171 = tpu.matmul %169, %170, %cst_38 {dimension_numbers = #tpu.dot_dimension_numbers<[1], [0], [0], [1], [0, 0, 1, 1], [], []>} : vector<64x64xf32>, vector<64x256xf32>, vector<64x256xf32> -> vector<64x256xf32>
    %c0_39 = arith.constant 0 : index
    %c0_40 = arith.constant 0 : index
    %172 = vector.load %arg7[%c0_39, %c0_40] : memref<1x256xf32, #tpu.memory_space<vmem>>, vector<1x256xf32>
    %173 = vector.broadcast %172 : vector<1x256xf32> to vector<64x256xf32>
    %174 = arith.addf %171, %173 : vector<64x256xf32>
    %c0_41 = arith.constant 0 : index
    %c0_42 = arith.constant 0 : index
    %175 = vector.load %arg6[%c0_41, %c0_42] : memref<64x256xf32, #tpu.memory_space<vmem>>, vector<64x256xf32>
    %cst_43 = arith.constant 0.000000e+00 : f32
    %176 = vector.broadcast %cst_43 : f32 to vector<8x64xf32>
    %cst_44 = arith.constant 0.000000e+00 : f32
    %177 = vector.broadcast %cst_44 : f32 to vector<8x64xf32>
    %178 = vector.extract_strided_slice %174 {offsets = [0, 0], sizes = [8, 256], strides = [1, 1]} : vector<64x256xf32> to vector<8x256xf32>
    %cst_45 = arith.constant dense<0.000000e+00> : vector<8x256xf32>
    %179 = tpu.matmul %176, %175, %cst_45 {dimension_numbers = #tpu.dot_dimension_numbers<[1], [0], [0], [1], [0, 0, 1, 1], [], []>} : vector<8x64xf32>, vector<64x256xf32>, vector<8x256xf32> -> vector<8x256xf32>
    %180 = arith.addf %178, %179 : vector<8x256xf32>
    %181 = vector.extract_strided_slice %180 {offsets = [0, 0], sizes = [8, 192], strides = [1, 1]} : vector<8x256xf32> to vector<8x192xf32>
    %182 = arith.negf %181 : vector<8x192xf32>
    %183 = math.exp %182 : vector<8x192xf32>
    %cst_46 = arith.constant 1.000000e+00 : f32
    %184 = vector.broadcast %cst_46 : f32 to vector<8x192xf32>
    %185 = arith.addf %184, %183 : vector<8x192xf32>
    %186 = arith.divf %184, %185 : vector<8x192xf32>
    %187 = vector.extract_strided_slice %186 {offsets = [0, 0], sizes = [8, 64], strides = [1, 1]} : vector<8x192xf32> to vector<8x64xf32>
    %188 = vector.extract_strided_slice %186 {offsets = [0, 64], sizes = [8, 64], strides = [1, 1]} : vector<8x192xf32> to vector<8x64xf32>
    %189 = vector.extract_strided_slice %186 {offsets = [0, 128], sizes = [8, 64], strides = [1, 1]} : vector<8x192xf32> to vector<8x64xf32>
    %190 = vector.extract_strided_slice %180 {offsets = [0, 192], sizes = [8, 64], strides = [1, 1]} : vector<8x256xf32> to vector<8x64xf32>
    %191 = math.tanh %190 : vector<8x64xf32>
    %192 = arith.mulf %188, %177 : vector<8x64xf32>
    %193 = arith.mulf %187, %191 : vector<8x64xf32>
    %194 = arith.addf %192, %193 : vector<8x64xf32>
    %195 = math.tanh %194 : vector<8x64xf32>
    %196 = arith.mulf %189, %195 : vector<8x64xf32>
    %197 = vector.extract_strided_slice %174 {offsets = [8, 0], sizes = [8, 256], strides = [1, 1]} : vector<64x256xf32> to vector<8x256xf32>
    %cst_47 = arith.constant dense<0.000000e+00> : vector<8x256xf32>
    %198 = tpu.matmul %196, %175, %cst_47 {dimension_numbers = #tpu.dot_dimension_numbers<[1], [0], [0], [1], [0, 0, 1, 1], [], []>} : vector<8x64xf32>, vector<64x256xf32>, vector<8x256xf32> -> vector<8x256xf32>
    %199 = arith.addf %197, %198 : vector<8x256xf32>
    %200 = vector.extract_strided_slice %199 {offsets = [0, 0], sizes = [8, 192], strides = [1, 1]} : vector<8x256xf32> to vector<8x192xf32>
    %201 = arith.negf %200 : vector<8x192xf32>
    %202 = math.exp %201 : vector<8x192xf32>
    %cst_48 = arith.constant 1.000000e+00 : f32
    %203 = vector.broadcast %cst_48 : f32 to vector<8x192xf32>
    %204 = arith.addf %203, %202 : vector<8x192xf32>
    %205 = arith.divf %203, %204 : vector<8x192xf32>
    %206 = vector.extract_strided_slice %205 {offsets = [0, 0], sizes = [8, 64], strides = [1, 1]} : vector<8x192xf32> to vector<8x64xf32>
    %207 = vector.extract_strided_slice %205 {offsets = [0, 64], sizes = [8, 64], strides = [1, 1]} : vector<8x192xf32> to vector<8x64xf32>
    %208 = vector.extract_strided_slice %205 {offsets = [0, 128], sizes = [8, 64], strides = [1, 1]} : vector<8x192xf32> to vector<8x64xf32>
    %209 = vector.extract_strided_slice %199 {offsets = [0, 192], sizes = [8, 64], strides = [1, 1]} : vector<8x256xf32> to vector<8x64xf32>
    %210 = math.tanh %209 : vector<8x64xf32>
    %211 = arith.mulf %207, %194 : vector<8x64xf32>
    %212 = arith.mulf %206, %210 : vector<8x64xf32>
    %213 = arith.addf %211, %212 : vector<8x64xf32>
    %214 = math.tanh %213 : vector<8x64xf32>
    %215 = arith.mulf %208, %214 : vector<8x64xf32>
    %216 = vector.extract_strided_slice %174 {offsets = [16, 0], sizes = [8, 256], strides = [1, 1]} : vector<64x256xf32> to vector<8x256xf32>
    %cst_49 = arith.constant dense<0.000000e+00> : vector<8x256xf32>
    %217 = tpu.matmul %215, %175, %cst_49 {dimension_numbers = #tpu.dot_dimension_numbers<[1], [0], [0], [1], [0, 0, 1, 1], [], []>} : vector<8x64xf32>, vector<64x256xf32>, vector<8x256xf32> -> vector<8x256xf32>
    %218 = arith.addf %216, %217 : vector<8x256xf32>
    %219 = vector.extract_strided_slice %218 {offsets = [0, 0], sizes = [8, 192], strides = [1, 1]} : vector<8x256xf32> to vector<8x192xf32>
    %220 = arith.negf %219 : vector<8x192xf32>
    %221 = math.exp %220 : vector<8x192xf32>
    %cst_50 = arith.constant 1.000000e+00 : f32
    %222 = vector.broadcast %cst_50 : f32 to vector<8x192xf32>
    %223 = arith.addf %222, %221 : vector<8x192xf32>
    %224 = arith.divf %222, %223 : vector<8x192xf32>
    %225 = vector.extract_strided_slice %224 {offsets = [0, 0], sizes = [8, 64], strides = [1, 1]} : vector<8x192xf32> to vector<8x64xf32>
    %226 = vector.extract_strided_slice %224 {offsets = [0, 64], sizes = [8, 64], strides = [1, 1]} : vector<8x192xf32> to vector<8x64xf32>
    %227 = vector.extract_strided_slice %224 {offsets = [0, 128], sizes = [8, 64], strides = [1, 1]} : vector<8x192xf32> to vector<8x64xf32>
    %228 = vector.extract_strided_slice %218 {offsets = [0, 192], sizes = [8, 64], strides = [1, 1]} : vector<8x256xf32> to vector<8x64xf32>
    %229 = math.tanh %228 : vector<8x64xf32>
    %230 = arith.mulf %226, %213 : vector<8x64xf32>
    %231 = arith.mulf %225, %229 : vector<8x64xf32>
    %232 = arith.addf %230, %231 : vector<8x64xf32>
    %233 = math.tanh %232 : vector<8x64xf32>
    %234 = arith.mulf %227, %233 : vector<8x64xf32>
    %235 = vector.extract_strided_slice %174 {offsets = [24, 0], sizes = [8, 256], strides = [1, 1]} : vector<64x256xf32> to vector<8x256xf32>
    %cst_51 = arith.constant dense<0.000000e+00> : vector<8x256xf32>
    %236 = tpu.matmul %234, %175, %cst_51 {dimension_numbers = #tpu.dot_dimension_numbers<[1], [0], [0], [1], [0, 0, 1, 1], [], []>} : vector<8x64xf32>, vector<64x256xf32>, vector<8x256xf32> -> vector<8x256xf32>
    %237 = arith.addf %235, %236 : vector<8x256xf32>
    %238 = vector.extract_strided_slice %237 {offsets = [0, 0], sizes = [8, 192], strides = [1, 1]} : vector<8x256xf32> to vector<8x192xf32>
    %239 = arith.negf %238 : vector<8x192xf32>
    %240 = math.exp %239 : vector<8x192xf32>
    %cst_52 = arith.constant 1.000000e+00 : f32
    %241 = vector.broadcast %cst_52 : f32 to vector<8x192xf32>
    %242 = arith.addf %241, %240 : vector<8x192xf32>
    %243 = arith.divf %241, %242 : vector<8x192xf32>
    %244 = vector.extract_strided_slice %243 {offsets = [0, 0], sizes = [8, 64], strides = [1, 1]} : vector<8x192xf32> to vector<8x64xf32>
    %245 = vector.extract_strided_slice %243 {offsets = [0, 64], sizes = [8, 64], strides = [1, 1]} : vector<8x192xf32> to vector<8x64xf32>
    %246 = vector.extract_strided_slice %243 {offsets = [0, 128], sizes = [8, 64], strides = [1, 1]} : vector<8x192xf32> to vector<8x64xf32>
    %247 = vector.extract_strided_slice %237 {offsets = [0, 192], sizes = [8, 64], strides = [1, 1]} : vector<8x256xf32> to vector<8x64xf32>
    %248 = math.tanh %247 : vector<8x64xf32>
    %249 = arith.mulf %245, %232 : vector<8x64xf32>
    %250 = arith.mulf %244, %248 : vector<8x64xf32>
    %251 = arith.addf %249, %250 : vector<8x64xf32>
    %252 = math.tanh %251 : vector<8x64xf32>
    %253 = arith.mulf %246, %252 : vector<8x64xf32>
    %254 = vector.extract_strided_slice %174 {offsets = [32, 0], sizes = [8, 256], strides = [1, 1]} : vector<64x256xf32> to vector<8x256xf32>
    %cst_53 = arith.constant dense<0.000000e+00> : vector<8x256xf32>
    %255 = tpu.matmul %253, %175, %cst_53 {dimension_numbers = #tpu.dot_dimension_numbers<[1], [0], [0], [1], [0, 0, 1, 1], [], []>} : vector<8x64xf32>, vector<64x256xf32>, vector<8x256xf32> -> vector<8x256xf32>
    %256 = arith.addf %254, %255 : vector<8x256xf32>
    %257 = vector.extract_strided_slice %256 {offsets = [0, 0], sizes = [8, 192], strides = [1, 1]} : vector<8x256xf32> to vector<8x192xf32>
    %258 = arith.negf %257 : vector<8x192xf32>
    %259 = math.exp %258 : vector<8x192xf32>
    %cst_54 = arith.constant 1.000000e+00 : f32
    %260 = vector.broadcast %cst_54 : f32 to vector<8x192xf32>
    %261 = arith.addf %260, %259 : vector<8x192xf32>
    %262 = arith.divf %260, %261 : vector<8x192xf32>
    %263 = vector.extract_strided_slice %262 {offsets = [0, 0], sizes = [8, 64], strides = [1, 1]} : vector<8x192xf32> to vector<8x64xf32>
    %264 = vector.extract_strided_slice %262 {offsets = [0, 64], sizes = [8, 64], strides = [1, 1]} : vector<8x192xf32> to vector<8x64xf32>
    %265 = vector.extract_strided_slice %262 {offsets = [0, 128], sizes = [8, 64], strides = [1, 1]} : vector<8x192xf32> to vector<8x64xf32>
    %266 = vector.extract_strided_slice %256 {offsets = [0, 192], sizes = [8, 64], strides = [1, 1]} : vector<8x256xf32> to vector<8x64xf32>
    %267 = math.tanh %266 : vector<8x64xf32>
    %268 = arith.mulf %264, %251 : vector<8x64xf32>
    %269 = arith.mulf %263, %267 : vector<8x64xf32>
    %270 = arith.addf %268, %269 : vector<8x64xf32>
    %271 = math.tanh %270 : vector<8x64xf32>
    %272 = arith.mulf %265, %271 : vector<8x64xf32>
    %273 = vector.extract_strided_slice %174 {offsets = [40, 0], sizes = [8, 256], strides = [1, 1]} : vector<64x256xf32> to vector<8x256xf32>
    %cst_55 = arith.constant dense<0.000000e+00> : vector<8x256xf32>
    %274 = tpu.matmul %272, %175, %cst_55 {dimension_numbers = #tpu.dot_dimension_numbers<[1], [0], [0], [1], [0, 0, 1, 1], [], []>} : vector<8x64xf32>, vector<64x256xf32>, vector<8x256xf32> -> vector<8x256xf32>
    %275 = arith.addf %273, %274 : vector<8x256xf32>
    %276 = vector.extract_strided_slice %275 {offsets = [0, 0], sizes = [8, 192], strides = [1, 1]} : vector<8x256xf32> to vector<8x192xf32>
    %277 = arith.negf %276 : vector<8x192xf32>
    %278 = math.exp %277 : vector<8x192xf32>
    %cst_56 = arith.constant 1.000000e+00 : f32
    %279 = vector.broadcast %cst_56 : f32 to vector<8x192xf32>
    %280 = arith.addf %279, %278 : vector<8x192xf32>
    %281 = arith.divf %279, %280 : vector<8x192xf32>
    %282 = vector.extract_strided_slice %281 {offsets = [0, 0], sizes = [8, 64], strides = [1, 1]} : vector<8x192xf32> to vector<8x64xf32>
    %283 = vector.extract_strided_slice %281 {offsets = [0, 64], sizes = [8, 64], strides = [1, 1]} : vector<8x192xf32> to vector<8x64xf32>
    %284 = vector.extract_strided_slice %281 {offsets = [0, 128], sizes = [8, 64], strides = [1, 1]} : vector<8x192xf32> to vector<8x64xf32>
    %285 = vector.extract_strided_slice %275 {offsets = [0, 192], sizes = [8, 64], strides = [1, 1]} : vector<8x256xf32> to vector<8x64xf32>
    %286 = math.tanh %285 : vector<8x64xf32>
    %287 = arith.mulf %283, %270 : vector<8x64xf32>
    %288 = arith.mulf %282, %286 : vector<8x64xf32>
    %289 = arith.addf %287, %288 : vector<8x64xf32>
    %290 = math.tanh %289 : vector<8x64xf32>
    %291 = arith.mulf %284, %290 : vector<8x64xf32>
    %292 = vector.extract_strided_slice %174 {offsets = [48, 0], sizes = [8, 256], strides = [1, 1]} : vector<64x256xf32> to vector<8x256xf32>
    %cst_57 = arith.constant dense<0.000000e+00> : vector<8x256xf32>
    %293 = tpu.matmul %291, %175, %cst_57 {dimension_numbers = #tpu.dot_dimension_numbers<[1], [0], [0], [1], [0, 0, 1, 1], [], []>} : vector<8x64xf32>, vector<64x256xf32>, vector<8x256xf32> -> vector<8x256xf32>
    %294 = arith.addf %292, %293 : vector<8x256xf32>
    %295 = vector.extract_strided_slice %294 {offsets = [0, 0], sizes = [8, 192], strides = [1, 1]} : vector<8x256xf32> to vector<8x192xf32>
    %296 = arith.negf %295 : vector<8x192xf32>
    %297 = math.exp %296 : vector<8x192xf32>
    %cst_58 = arith.constant 1.000000e+00 : f32
    %298 = vector.broadcast %cst_58 : f32 to vector<8x192xf32>
    %299 = arith.addf %298, %297 : vector<8x192xf32>
    %300 = arith.divf %298, %299 : vector<8x192xf32>
    %301 = vector.extract_strided_slice %300 {offsets = [0, 0], sizes = [8, 64], strides = [1, 1]} : vector<8x192xf32> to vector<8x64xf32>
    %302 = vector.extract_strided_slice %300 {offsets = [0, 64], sizes = [8, 64], strides = [1, 1]} : vector<8x192xf32> to vector<8x64xf32>
    %303 = vector.extract_strided_slice %300 {offsets = [0, 128], sizes = [8, 64], strides = [1, 1]} : vector<8x192xf32> to vector<8x64xf32>
    %304 = vector.extract_strided_slice %294 {offsets = [0, 192], sizes = [8, 64], strides = [1, 1]} : vector<8x256xf32> to vector<8x64xf32>
    %305 = math.tanh %304 : vector<8x64xf32>
    %306 = arith.mulf %302, %289 : vector<8x64xf32>
    %307 = arith.mulf %301, %305 : vector<8x64xf32>
    %308 = arith.addf %306, %307 : vector<8x64xf32>
    %309 = math.tanh %308 : vector<8x64xf32>
    %310 = arith.mulf %303, %309 : vector<8x64xf32>
    %311 = vector.extract_strided_slice %174 {offsets = [56, 0], sizes = [8, 256], strides = [1, 1]} : vector<64x256xf32> to vector<8x256xf32>
    %cst_59 = arith.constant dense<0.000000e+00> : vector<8x256xf32>
    %312 = tpu.matmul %310, %175, %cst_59 {dimension_numbers = #tpu.dot_dimension_numbers<[1], [0], [0], [1], [0, 0, 1, 1], [], []>} : vector<8x64xf32>, vector<64x256xf32>, vector<8x256xf32> -> vector<8x256xf32>
    %313 = arith.addf %311, %312 : vector<8x256xf32>
    %314 = vector.extract_strided_slice %313 {offsets = [0, 0], sizes = [8, 192], strides = [1, 1]} : vector<8x256xf32> to vector<8x192xf32>
    %315 = arith.negf %314 : vector<8x192xf32>
    %316 = math.exp %315 : vector<8x192xf32>
    %cst_60 = arith.constant 1.000000e+00 : f32
    %317 = vector.broadcast %cst_60 : f32 to vector<8x192xf32>
    %318 = arith.addf %317, %316 : vector<8x192xf32>
    %319 = arith.divf %317, %318 : vector<8x192xf32>
    %320 = vector.extract_strided_slice %319 {offsets = [0, 0], sizes = [8, 64], strides = [1, 1]} : vector<8x192xf32> to vector<8x64xf32>
    %321 = vector.extract_strided_slice %319 {offsets = [0, 64], sizes = [8, 64], strides = [1, 1]} : vector<8x192xf32> to vector<8x64xf32>
    %322 = vector.extract_strided_slice %319 {offsets = [0, 128], sizes = [8, 64], strides = [1, 1]} : vector<8x192xf32> to vector<8x64xf32>
    %323 = vector.extract_strided_slice %313 {offsets = [0, 192], sizes = [8, 64], strides = [1, 1]} : vector<8x256xf32> to vector<8x64xf32>
    %324 = math.tanh %323 : vector<8x64xf32>
    %325 = arith.mulf %321, %308 : vector<8x64xf32>
    %326 = arith.mulf %320, %324 : vector<8x64xf32>
    %327 = arith.addf %325, %326 : vector<8x64xf32>
    %328 = math.tanh %327 : vector<8x64xf32>
    %329 = arith.mulf %322, %328 : vector<8x64xf32>
    %c0_61 = arith.constant 0 : index
    %c0_62 = arith.constant 0 : index
    %330 = vector.load %arg8[%c0_61, %c0_62] : memref<64x128xf32, #tpu.memory_space<vmem>>, vector<64x128xf32>
    %cst_63 = arith.constant dense<0.000000e+00> : vector<8x128xf32>
    %331 = tpu.matmul %329, %330, %cst_63 {dimension_numbers = #tpu.dot_dimension_numbers<[1], [0], [0], [1], [0, 0, 1, 1], [], []>} : vector<8x64xf32>, vector<64x128xf32>, vector<8x128xf32> -> vector<8x128xf32>
    %c0_64 = arith.constant 0 : index
    %c0_65 = arith.constant 0 : index
    %332 = vector.load %arg9[%c0_64, %c0_65] : memref<1x128xf32, #tpu.memory_space<vmem>>, vector<1x128xf32>
    %333 = vector.broadcast %332 : vector<1x128xf32> to vector<8x128xf32>
    %334 = arith.addf %331, %333 : vector<8x128xf32>
    %c0_66 = arith.constant 0 : index
    %c0_67 = arith.constant 0 : index
    %335 = vector.load %arg10[%c0_66, %c0_67] : memref<8x128xf32, #tpu.memory_space<vmem>>, vector<8x128xf32>
    tpu.vector_store %arg10[%c0_66, %c0_67], %334 {strides = array<i32>} : memref<8x128xf32, #tpu.memory_space<vmem>>, vector<8x128xf32>,
    return
  }
  func.func @transform_0(%arg0: i32) -> (i32, i32) {
    %c0_i32 = arith.constant 0 : i32
    %c0_i32_0 = arith.constant 0 : i32
    %c0_i32_1 = arith.constant 0 : i32
    return %c0_i32, %c0_i32_0 : i32, i32
  }
  func.func @transform_1(%arg0: i32) -> (i32, i32) {
    %c0_i32 = arith.constant 0 : i32
    %c0_i32_0 = arith.constant 0 : i32
    %c0_i32_1 = arith.constant 0 : i32
    return %c0_i32, %c0_i32_0 : i32, i32
  }
  func.func @transform_2(%arg0: i32) -> (i32, i32) {
    %c0_i32 = arith.constant 0 : i32
    %c0_i32_0 = arith.constant 0 : i32
    %c0_i32_1 = arith.constant 0 : i32
    return %c0_i32, %c0_i32_0 : i32, i32
  }
  func.func @transform_3(%arg0: i32) -> (i32, i32) {
    %c0_i32 = arith.constant 0 : i32
    %c0_i32_0 = arith.constant 0 : i32
    %c0_i32_1 = arith.constant 0 : i32
    return %c0_i32, %c0_i32_0 : i32, i32
  }
  func.func @transform_4(%arg0: i32) -> (i32, i32) {
    %c0_i32 = arith.constant 0 : i32
    %c0_i32_0 = arith.constant 0 : i32
    %c0_i32_1 = arith.constant 0 : i32
    return %c0_i32, %c0_i32_0 : i32, i32
  }
  func.func @transform_5(%arg0: i32) -> (i32, i32) {
    %c0_i32 = arith.constant 0 : i32
    %c0_i32_0 = arith.constant 0 : i32
    %c0_i32_1 = arith.constant 0 : i32
    return %c0_i32, %c0_i32_0 : i32, i32
  }
  func.func @transform_6(%arg0: i32) -> (i32, i32) {
    %c0_i32 = arith.constant 0 : i32
    %c0_i32_0 = arith.constant 0 : i32
    %c0_i32_1 = arith.constant 0 : i32
    return %c0_i32, %c0_i32_0 : i32, i32
  }
  func.func @transform_7(%arg0: i32) -> (i32, i32) {
    %c0_i32 = arith.constant 0 : i32
    %c0_i32_0 = arith.constant 0 : i32
    %c0_i32_1 = arith.constant 0 : i32
    return %c0_i32, %c0_i32_0 : i32, i32
  }
  func.func @transform_8(%arg0: i32) -> (i32, i32) {
    %c0_i32 = arith.constant 0 : i32
    %c0_i32_0 = arith.constant 0 : i32
    %c0_i32_1 = arith.constant 0 : i32
    return %c0_i32, %c0_i32_0 : i32, i32
  }
  func.func @transform_9(%arg0: i32) -> (i32, i32) {
    %c0_i32 = arith.constant 0 : i32
    %c0_i32_0 = arith.constant 0 : i32
    %c0_i32_1 = arith.constant 0 : i32
    return %c0_i32, %c0_i32_0 : i32, i32
  }
}

</mosaic_0001>

<llo_original>
// kernel: tpu_custom_call.1
$region0: #{tpu_custom_call.1}
  #allocation0 [shape = 'u32[]', space=smem, size = 0x4, offset = 0x4, fixed_abs, tag = 'smem constant byte address 0x4 - core index']
  #allocation1 [shape = 'u32[144,128]{1,0:T(1,128)}', space=vmem, size = 0x12000, scoped, tag = 'internal scratch']
  #allocation2 [shape = 'f32[64,64]{1,0:T(8,128)}', space=vmem, size = 0x8000, scoped, tag = 'scratch operand']
  %s0 = inlined_call_operand.vmem [shape: f32[64,9], index: 0, kind: input, shape index: {}]
  %s1 = inlined_call_operand.hbm [shape: f32[9,256], index: 1, kind: input, shape index: {}]
  %s2 = inlined_call_operand.hbm [shape: f32[64,256], index: 2, kind: input, shape index: {}]
  %s3 = inlined_call_operand.vmem [shape: f32[1,256], index: 3, kind: input, shape index: {}]
  %s4 = inlined_call_operand.hbm [shape: f32[64,256], index: 4, kind: input, shape index: {}]
  %s5 = inlined_call_operand.hbm [shape: f32[64,256], index: 5, kind: input, shape index: {}]
  %s6 = inlined_call_operand.vmem [shape: f32[1,256], index: 6, kind: input, shape index: {}]
  %s7 = inlined_call_operand.vmem [shape: f32[64,128], index: 7, kind: input, shape index: {}]
  %s8 = inlined_call_operand.vmem [shape: f32[1,128], index: 8, kind: input, shape index: {}]
  %s9 = inlined_call_operand.hbm [shape: f32[8,128], index: 9, kind: output, shape index: {}]
  %s10 = sld [smem:[#allocation0]]
  $region62: #{tpu_custom_call.1} parent=0
    _
  %s12 = ssub.s32 1, %s10
  %s13 = scalar_select 0, %s12, %s10
  $region1: #{tpu_custom_call.1} parent=0
    #allocation3 [shape = 'u8[16384]{0}', space=vmem, size = 0x4000, scoped, tag = 'input window, operand 1, single buffered']
    #allocation4 [shape = 's32[1]{0}', space=sflag, size = 0x4, scoped, tag = 'scoped memory for tpu_custom_call.1']
    #allocation5 [shape = 's32[1]{0}', space=sflag, size = 0x4, scoped, tag = 'scoped memory for tpu_custom_call.1']
    #allocation6 [shape = 'u8[65536]{0}', space=vmem, size = 0x10000, scoped, tag = 'input window, operand 2, single buffered']
    #allocation7 [shape = 's32[1]{0}', space=sflag, size = 0x4, scoped, tag = 'scoped memory for tpu_custom_call.1']
    #allocation8 [shape = 'u8[65536]{0}', space=vmem, size = 0x10000, scoped, tag = 'input window, operand 4, single buffered']
    #allocation9 [shape = 'u8[65536]{0}', space=vmem, size = 0x10000, scoped, tag = 'input window, operand 5, single buffered']
    #allocation10 [shape = 's32[1]{0}', space=sflag, size = 0x4, scoped, tag = 'scoped memory for tpu_custom_call.1']
    #allocation11 [shape = 'u8[4096]{0}', space=vmem, size = 0x1000, scoped, tag = 'output window, operand 0, single buffered']
    %14 = vsyncpa [#allocation4], 0
    %15 = vsyncpa [#allocation7], 0
    %16 = vsyncpa [#allocation10], 0
    %17 = vsyncpa [#allocation5], 0
    // Predicated region
    $region2: #{tpu_custom_call.1} parent=1 // pred_check
      _
    $region3: #{tpu_custom_call.1} parent=1 // pred_check_branch
      %19 = sbr.rel (0) target = $region5
    $region4: #{tpu_custom_call.1} parent=1 // pred_region
      _
    $region5: #{tpu_custom_call.1} parent=1 // pred_fallthru
      _
    // Predicated region
    $region6: #{tpu_custom_call.1} parent=1 // pred_check
      _
    $region7: #{tpu_custom_call.1} parent=1 // pred_check_branch
      %21 = sbr.rel (0) target = $region9
    $region8: #{tpu_custom_call.1} parent=1 // pred_region
      %s23 = ssub.s32 512, 512
      %24 = vsyncadd [#allocation4], %s23
      %s25 = sshll.u32 [#allocation3], 4
      %s26 = int_to_ptr.vmem [resolvable:$true] %s25
      %31 = dma.hbm_to_vmem [thread:$0]  %s1, 512, %s26, [#allocation4], 256, 256, 16
    $region9: #{tpu_custom_call.1} parent=1 // pred_fallthru
      _
    // Predicated region
    $region10: #{tpu_custom_call.1} parent=1 // pred_check
      _
    $region11: #{tpu_custom_call.1} parent=1 // pred_check_branch
      %33 = sbr.rel (0) target = $region13
    $region12: #{tpu_custom_call.1} parent=1 // pred_region
      %s35 = ssub.s32 2048, 2048
      %36 = vsyncadd [#allocation7], %s35
      %s37 = sshll.u32 [#allocation6], 4
      %s38 = int_to_ptr.vmem [resolvable:$true] %s37
      %43 = dma.hbm_to_vmem [thread:$0]  %s2, 2048, %s38, [#allocation7], 256, 256, 16
    $region13: #{tpu_custom_call.1} parent=1 // pred_fallthru
      _
    // Predicated region
    $region14: #{tpu_custom_call.1} parent=1 // pred_check
      _
    $region15: #{tpu_custom_call.1} parent=1 // pred_check_branch
      %45 = sbr.rel (0) target = $region17
    $region16: #{tpu_custom_call.1} parent=1 // pred_region
      _
    $region17: #{tpu_custom_call.1} parent=1 // pred_fallthru
      _
    // Predicated region
    $region18: #{tpu_custom_call.1} parent=1 // pred_check
      _
    $region19: #{tpu_custom_call.1} parent=1 // pred_check_branch
      %47 = sbr.rel (0) target = $region21
    $region20: #{tpu_custom_call.1} parent=1 // pred_region
      %s49 = ssub.s32 2048, 2048
      %50 = vsyncadd [#allocation7], %s49
      %s51 = sshll.u32 [#allocation8], 4
      %s52 = int_to_ptr.vmem [resolvable:$true] %s51
      %57 = dma.hbm_to_vmem [thread:$0]  %s4, 2048, %s52, [#allocation7], 256, 256, 16
    $region21: #{tpu_custom_call.1} parent=1 // pred_fallthru
      _
    // Predicated region
    $region22: #{tpu_custom_call.1} parent=1 // pred_check
      _
    $region23: #{tpu_custom_call.1} parent=1 // pred_check_branch
      %59 = sbr.rel (0) target = $region25
    $region24: #{tpu_custom_call.1} parent=1 // pred_region
      %s61 = ssub.s32 2048, 2048
      %62 = vsyncadd [#allocation10], %s61
      %s63 = sshll.u32 [#allocation9], 4
      %s64 = int_to_ptr.vmem [resolvable:$true] %s63
      %69 = dma.hbm_to_vmem [thread:$0]  %s5, 2048, %s64, [#allocation10], 256, 256, 16
    $region25: #{tpu_custom_call.1} parent=1 // pred_fallthru
      _
    // Predicated region
    $region26: #{tpu_custom_call.1} parent=1 // pred_check
      _
    $region27: #{tpu_custom_call.1} parent=1 // pred_check_branch
      %71 = sbr.rel (0) target = $region29
    $region28: #{tpu_custom_call.1} parent=1 // pred_region
      _
    $region29: #{tpu_custom_call.1} parent=1 // pred_fallthru
      _
    // Predicated region
    $region30: #{tpu_custom_call.1} parent=1 // pred_check
      _
    $region31: #{tpu_custom_call.1} parent=1 // pred_check_branch
      %73 = sbr.rel (0) target = $region33
    $region32: #{tpu_custom_call.1} parent=1 // pred_region
      _
    $region33: #{tpu_custom_call.1} parent=1 // pred_fallthru
      _
    // Predicated region
    $region34: #{tpu_custom_call.1} parent=1 // pred_check
      _
    $region35: #{tpu_custom_call.1} parent=1 // pred_check_branch
      %75 = sbr.rel (0) target = $region37
    $region36: #{tpu_custom_call.1} parent=1 // pred_region
      _
    $region37: #{tpu_custom_call.1} parent=1 // pred_fallthru
      _
    // Predicated region
    $region38: #{tpu_custom_call.1} parent=1 // pred_check
      _
    $region39: #{tpu_custom_call.1} parent=1 // pred_check_branch
      %77 = sbr.rel (0) target = $region41
    $region40: #{tpu_custom_call.1} parent=1 // pred_region
      %78 = dma.done [#allocation4], 512
    $region41: #{tpu_custom_call.1} parent=1 // pred_fallthru
      _
    // Predicated region
    $region42: #{tpu_custom_call.1} parent=1 // pred_check
      _
    $region43: #{tpu_custom_call.1} parent=1 // pred_check_branch
      %80 = sbr.rel (0) target = $region45
    $region44: #{tpu_custom_call.1} parent=1 // pred_region
      %81 = dma.done [#allocation7], 2048
    $region45: #{tpu_custom_call.1} parent=1 // pred_fallthru
      _
    // Predicated region
    $region46: #{tpu_custom_call.1} parent=1 // pred_check
      _
    $region47: #{tpu_custom_call.1} parent=1 // pred_check_branch
      %83 = sbr.rel (0) target = $region49
    $region48: #{tpu_custom_call.1} parent=1 // pred_region
      %84 = dma.done [#allocation7], 2048
    $region49: #{tpu_custom_call.1} parent=1 // pred_fallthru
      _
    // Predicated region
    $region50: #{tpu_custom_call.1} parent=1 // pred_check
      _
    $region51: #{tpu_custom_call.1} parent=1 // pred_check_branch
      %86 = sbr.rel (0) target = $region53
    $region52: #{tpu_custom_call.1} parent=1 // pred_region
      %87 = dma.done [#allocation10], 2048
    $region53: #{tpu_custom_call.1} parent=1 // pred_fallthru
      _
    %v88 = vld [vmem:[%s0] sm:$0xff]
    %v89 = vld [vmem:[%s0 + $0x8] sm:$0xff]
    %v90 = vld [vmem:[%s0 + $0x10] sm:$0xff]
    %v91 = vld [vmem:[%s0 + $0x18] sm:$0xff]
    %v92 = vld [vmem:[%s0 + $0x20] sm:$0xff]
    %v93 = vld [vmem:[%s0 + $0x28] sm:$0xff]
    %v94 = vld [vmem:[%s0 + $0x30] sm:$0xff]
    %v95 = vld [vmem:[%s0 + $0x38] sm:$0xff]
    %v96 = vld [vmem:[#allocation3] sm:$0xff]
    %v97 = vld [vmem:[#allocation3 + $0x8] sm:$0xff]
    %v98 = vld [vmem:[#allocation3 + $0x10] sm:$0x1]
    %v99 = vld [vmem:[#allocation3 + $0x18] sm:$0x1]
    %v100 = vld [vmem:[%s3] sm:$0x3]
    %v102 = vlaneseq
    %v103 = vshrl.u32 %v102, 7
    %v104 = vsub.s32 0, %v103
    %v105 = vrot.slane %v100, %v104
    %v106 = vlaneseq
    %v107 = vshrl.u32 %v106, 7
    %v108 = vsub.s32 1, %v107
    %v109 = vrot.slane %v100, %v108
    %vm112 = vcmask 72704
    %v114 = vsel %vm112, %v88, 0
    %v117 = vsel %vm112, %v89, 0
    %v120 = vsel %vm112, %v90, 0
    %v123 = vsel %vm112, %v91, 0
    %v126 = vsel %vm112, %v92, 0
    %v129 = vsel %vm112, %v93, 0
    %v132 = vsel %vm112, %v94, 0
    %v135 = vsel %vm112, %v95, 0
    %vm137 = vcmask 1040384
    %v139 = vsel %vm137, %v98, 0
    %v142 = vsel %vm137, %v99, 0
    %144 = vmatprep.subr.mxu0 0.0
    %145 = vmatpush1.msra.mxu0 0.0
    %146 = vmatprep.subr.mxu0 0.0
    %147 = vmatpush1.msra.mxu0 0.0
    %148 = vmatprep.subr.mxu0 0.0
    %149 = vmatpush1.msra.mxu0 0.0
    %150 = vmatprep.subr.mxu0 0.0
    %151 = vmatpush1.msra.mxu0 0.0
    %152 = vmatprep.subr.mxu0 0.0
    %153 = vmatpush1.msra.mxu0 0.0
    %154 = vmatprep.subr.mxu0 0.0
    %155 = vmatpush1.msra.mxu0 0.0
    %156 = vmatprep.subr.mxu0 0.0
    %157 = vmatpush1.msra.mxu0 0.0
    %158 = vmatprep.subr.mxu0 0.0
    %159 = vmatpush1.msra.mxu0 0.0
    %160 = vmatprep.subr.mxu0 0.0
    %161 = vmatpush1.msra.mxu0 0.0
    %162 = vmatprep.subr.mxu0 0.0
    %163 = vmatpush1.msra.mxu0 0.0
    %164 = vmatprep.subr.mxu0 0.0
    %165 = vmatpush1.msra.mxu0 0.0
    %166 = vmatprep.subr.mxu0 0.0
    %167 = vmatpush1.msra.mxu0 0.0
    %168 = vmatprep.subr.mxu0 0.0
    %169 = vmatpush1.msra.mxu0 0.0
    %170 = vmatprep.subr.mxu0 0.0
    %171 = vmatpush1.msra.mxu0 0.0
    %172 = vmatprep.subr.mxu0 %v142
    %173 = vmatpush1.msra.mxu0 %v139
    %174 = vmatprep.subr.mxu0 %v97
    %175 = vmatpush1.msra.mxu0 %v96
    %176 = vmatprep.subr.mxu0 0.0
    %177 = vmatpush2.msra.mxu0 0.0
    %178 = vmatprep.subr.mxu0 0.0
    %179 = vmatpush2.msra.mxu0 0.0
    %180 = vmatprep.subr.mxu0 0.0
    %181 = vmatpush2.msra.mxu0 0.0
    %182 = vmatprep.subr.mxu0 0.0
    %183 = vmatpush2.msra.mxu0 0.0
    %184 = vmatprep.subr.mxu0 0.0
    %185 = vmatpush2.msra.mxu0 0.0
    %186 = vmatprep.subr.mxu0 0.0
    %187 = vmatpush2.msra.mxu0 0.0
    %188 = vmatprep.subr.mxu0 0.0
    %189 = vmatpush2.msra.mxu0 0.0
    %190 = vmatprep.subr.mxu0 0.0
    %191 = vmatpush2.msra.mxu0 0.0
    %192 = vmatprep.subr.mxu0 0.0
    %193 = vmatpush2.msra.mxu0 0.0
    %194 = vmatprep.subr.mxu0 0.0
    %195 = vmatpush2.msra.mxu0 0.0
    %196 = vmatprep.subr.mxu0 0.0
    %197 = vmatpush2.msra.mxu0 0.0
    %198 = vmatprep.subr.mxu0 0.0
    %199 = vmatpush2.msra.mxu0 0.0
    %200 = vmatprep.subr.mxu0 0.0
    %201 = vmatpush2.msra.mxu0 0.0
    %202 = vmatprep.subr.mxu0 0.0
    %203 = vmatpush2.msra.mxu0 0.0
    %204 = vmatprep.subr.mxu0 0.0
    %205 = vmatpush2.msra.mxu0 0.0
    %206 = vmatprep.subr.mxu0 0.0
    %207 = vmatpush2.msra.mxu0 0.0
    %208 = vmatprep.mubr.f32.mxu0 0.0
    %209 = vmatmul.mubr.f32.gmra.mxu0 %v114
    %v210 = vpop.f32.mrf.mxu0
    %v211 = vadd.f32 %v105, %v210
    %v212 = vpop.f32.mrf.mxu0
    %v213 = vadd.f32 %v109, %v212
    %214 = vmatprep.mubr.f32.mxu0 0.0
    %215 = vmatmul.mubr.f32.gmra.mxu0 %v117
    %v216 = vpop.f32.mrf.mxu0
    %v217 = vadd.f32 %v105, %v216
    %v218 = vpop.f32.mrf.mxu0
    %v219 = vadd.f32 %v109, %v218
    %220 = vmatprep.mubr.f32.mxu0 0.0
    %221 = vmatmul.mubr.f32.gmra.mxu0 %v120
    %v222 = vpop.f32.mrf.mxu0
    %v223 = vadd.f32 %v105, %v222
    %v224 = vpop.f32.mrf.mxu0
    %v225 = vadd.f32 %v109, %v224
    %226 = vmatprep.mubr.f32.mxu0 0.0
    %227 = vmatmul.mubr.f32.gmra.mxu0 %v123
    %v228 = vpop.f32.mrf.mxu0
    %v229 = vadd.f32 %v105, %v228
    %v230 = vpop.f32.mrf.mxu0
    %v231 = vadd.f32 %v109, %v230
    %232 = vmatprep.mubr.f32.mxu0 0.0
    %233 = vmatmul.mubr.f32.gmra.mxu0 %v126
    %v234 = vpop.f32.mrf.mxu0
    %v235 = vadd.f32 %v105, %v234
    %v236 = vpop.f32.mrf.mxu0
    %v237 = vadd.f32 %v109, %v236
    %238 = vmatprep.mubr.f32.mxu0 0.0
    %239 = vmatmul.mubr.f32.gmra.mxu0 %v129
    %v240 = vpop.f32.mrf.mxu0
    %v241 = vadd.f32 %v105, %v240
    %v242 = vpop.f32.mrf.mxu0
    %v243 = vadd.f32 %v109, %v242
    %244 = vmatprep.mubr.f32.mxu0 0.0
    %245 = vmatmul.mubr.f32.gmra.mxu0 %v132
    %v246 = vpop.f32.mrf.mxu0
    %v247 = vadd.f32 %v105, %v246
    %v248 = vpop.f32.mrf.mxu0
    %v249 = vadd.f32 %v109, %v248
    %250 = vmatprep.mubr.f32.mxu0 0.0
    %251 = vmatmul.mubr.f32.gmra.mxu0 %v135
    %v252 = vpop.f32.mrf.mxu0
    %v253 = vadd.f32 %v105, %v252
    %v254 = vpop.f32.mrf.mxu0
    %v255 = vadd.f32 %v109, %v254
    %256 = vdwg.mxu0
    %v257 = vld [vmem:[#allocation6] sm:$0xff]
    %v258 = vld [vmem:[#allocation6 + $0x8] sm:$0xff]
    %v259 = vld [vmem:[#allocation6 + $0x10] sm:$0xff]
    %v260 = vld [vmem:[#allocation6 + $0x18] sm:$0xff]
    %v261 = vld [vmem:[#allocation6 + $0x20] sm:$0xff]
    %v262 = vld [vmem:[#allocation6 + $0x28] sm:$0xff]
    %v263 = vld [vmem:[#allocation6 + $0x30] sm:$0xff]
    %v264 = vld [vmem:[#allocation6 + $0x38] sm:$0xff]
    %v265 = vld [vmem:[#allocation6 + $0x40] sm:$0xff]
    %v266 = vld [vmem:[#allocation6 + $0x48] sm:$0xff]
    %v267 = vld [vmem:[#allocation6 + $0x50] sm:$0xff]
    %v268 = vld [vmem:[#allocation6 + $0x58] sm:$0xff]
    %v269 = vld [vmem:[#allocation6 + $0x60] sm:$0xff]
    %v270 = vld [vmem:[#allocation6 + $0x68] sm:$0xff]
    %v271 = vld [vmem:[#allocation6 + $0x70] sm:$0xff]
    %v272 = vld [vmem:[#allocation6 + $0x78] sm:$0xff]
    %vm273 = vcmask 523264
    %v275 = vsel %vm273, 0.0, 0
    %277 = vmatprep.subr.mxu0 0.0
    %278 = vmatpush1.msra.mxu0 0.0
    %279 = vmatprep.subr.mxu0 0.0
    %280 = vmatpush1.msra.mxu0 0.0
    %281 = vmatprep.subr.mxu0 0.0
    %282 = vmatpush1.msra.mxu0 0.0
    %283 = vmatprep.subr.mxu0 0.0
    %284 = vmatpush1.msra.mxu0 0.0
    %285 = vmatprep.subr.mxu0 0.0
    %286 = vmatpush1.msra.mxu0 0.0
    %287 = vmatprep.subr.mxu0 0.0
    %288 = vmatpush1.msra.mxu0 0.0
    %289 = vmatprep.subr.mxu0 0.0
    %290 = vmatpush1.msra.mxu0 0.0
    %291 = vmatprep.subr.mxu0 0.0
    %292 = vmatpush1.msra.mxu0 0.0
    %293 = vmatprep.subr.mxu0 %v272
    %294 = vmatpush1.msra.mxu0 %v271
    %295 = vmatprep.subr.mxu0 %v270
    %296 = vmatpush1.msra.mxu0 %v269
    %297 = vmatprep.subr.mxu0 %v268
    %298 = vmatpush1.msra.mxu0 %v267
    %299 = vmatprep.subr.mxu0 %v266
    %300 = vmatpush1.msra.mxu0 %v265
    %301 = vmatprep.subr.mxu0 %v264
    %302 = vmatpush1.msra.mxu0 %v263
    %303 = vmatprep.subr.mxu0 %v262
    %304 = vmatpush1.msra.mxu0 %v261
    %305 = vmatprep.subr.mxu0 %v260
    %306 = vmatpush1.msra.mxu0 %v259
    %307 = vmatprep.subr.mxu0 %v258
    %308 = vmatpush1.msra.mxu0 %v257
    %309 = vmatprep.subr.mxu0 0.0
    %310 = vmatpush2.msra.mxu0 0.0
    %311 = vmatprep.subr.mxu0 0.0
    %312 = vmatpush2.msra.mxu0 0.0
    %313 = vmatprep.subr.mxu0 0.0
    %314 = vmatpush2.msra.mxu0 0.0
    %315 = vmatprep.subr.mxu0 0.0
    %316 = vmatpush2.msra.mxu0 0.0
    %317 = vmatprep.subr.mxu0 0.0
    %318 = vmatpush2.msra.mxu0 0.0
    %319 = vmatprep.subr.mxu0 0.0
    %320 = vmatpush2.msra.mxu0 0.0
    %321 = vmatprep.subr.mxu0 0.0
    %322 = vmatpush2.msra.mxu0 0.0
    %323 = vmatprep.subr.mxu0 0.0
    %324 = vmatpush2.msra.mxu0 0.0
    %325 = vmatprep.subr.mxu0 0.0
    %326 = vmatpush2.msra.mxu0 0.0
    %327 = vmatprep.subr.mxu0 0.0
    %328 = vmatpush2.msra.mxu0 0.0
    %329 = vmatprep.subr.mxu0 0.0
    %330 = vmatpush2.msra.mxu0 0.0
    %331 = vmatprep.subr.mxu0 0.0
    %332 = vmatpush2.msra.mxu0 0.0
    %333 = vmatprep.subr.mxu0 0.0
    %334 = vmatpush2.msra.mxu0 0.0
    %335 = vmatprep.subr.mxu0 0.0
    %336 = vmatpush2.msra.mxu0 0.0
    %337 = vmatprep.subr.mxu0 0.0
    %338 = vmatpush2.msra.mxu0 0.0
    %339 = vmatprep.subr.mxu0 0.0
    %340 = vmatpush2.msra.mxu0 0.0
    %341 = vmatprep.mubr.f32.mxu0 0.0
    %342 = vmatmul.mubr.f32.gmra.mxu0 %v275
    %v343 = vpop.f32.mrf.mxu0
    %v344 = vadd.f32 0.0, %v343
    %v345 = vpop.f32.mrf.mxu0
    %v346 = vadd.f32 0.0, %v345
    %347 = vdwg.mxu0
    %v348 = vadd.f32 %v211, %v344
    %v349 = vadd.f32 %v213, %v346
    %v350 = vxor.u32 %v348, 2147483648
    %v351 = vxor.u32 %v349, 2147483648
    %v352 = vmul.f32 %v350, 1.442695
    %v353 = vpow.pop %v352
    %v354 = vmul.f32 %v351, 1.442695
    %v355 = vpow.pop %v354
    %v356 = vadd.f32 %v353, 1.0
    %v357 = vadd.f32 %v355, 1.0
    %v358 = vrcp.pop %v356
    %v359 = vmul.f32 1.0, %v358
    %v360 = vrcp.pop %v357
    %v361 = vmul.f32 1.0, %v360
    %v362 = vtanh.pop %v349
    %v363 = vmul.f32 %v359, 0.0
    %365 = vrot.lane.b32.xlu0 %v362, 64
    %v366 = vpop.permute.xlu0 %365
    %v368 = vmul.f32 %v359, %v366
    %370 = vrot.lane.b32.xlu0 %v368, 64
    %v371 = vpop.permute.xlu0 %370
    %v373 = vadd.f32 %v363, %v371
    %v374 = vtanh.pop %v373
    %376 = vrot.lane.b32.xlu0 %v374, 64
    %v377 = vpop.permute.xlu0 %376
    %v379 = vmul.f32 %v361, %v377
    %380 = vst.msk [vmem:[#allocation2] sm:$0xff] %vm273, %v379
    %v382 = vsel %vm273, %v379, 0
    %384 = vmatprep.subr.mxu0 0.0
    %385 = vmatpush1.msra.mxu0 0.0
    %386 = vmatprep.subr.mxu0 0.0
    %387 = vmatpush1.msra.mxu0 0.0
    %388 = vmatprep.subr.mxu0 0.0
    %389 = vmatpush1.msra.mxu0 0.0
    %390 = vmatprep.subr.mxu0 0.0
    %391 = vmatpush1.msra.mxu0 0.0
    %392 = vmatprep.subr.mxu0 0.0
    %393 = vmatpush1.msra.mxu0 0.0
    %394 = vmatprep.subr.mxu0 0.0
    %395 = vmatpush1.msra.mxu0 0.0
    %396 = vmatprep.subr.mxu0 0.0
    %397 = vmatpush1.msra.mxu0 0.0
    %398 = vmatprep.subr.mxu0 0.0
    %399 = vmatpush1.msra.mxu0 0.0
    %400 = vmatprep.subr.mxu0 %v272
    %401 = vmatpush1.msra.mxu0 %v271
    %402 = vmatprep.subr.mxu0 %v270
    %403 = vmatpush1.msra.mxu0 %v269
    %404 = vmatprep.subr.mxu0 %v268
    %405 = vmatpush1.msra.mxu0 %v267
    %406 = vmatprep.subr.mxu0 %v266
    %407 = vmatpush1.msra.mxu0 %v265
    %408 = vmatprep.subr.mxu0 %v264
    %409 = vmatpush1.msra.mxu0 %v263
    %410 = vmatprep.subr.mxu0 %v262
    %411 = vmatpush1.msra.mxu0 %v261
    %412 = vmatprep.subr.mxu0 %v260
    %413 = vmatpush1.msra.mxu0 %v259
    %414 = vmatprep.subr.mxu0 %v258
    %415 = vmatpush1.msra.mxu0 %v257
    %416 = vmatprep.subr.mxu0 0.0
    %417 = vmatpush2.msra.mxu0 0.0
    %418 = vmatprep.subr.mxu0 0.0
    %419 = vmatpush2.msra.mxu0 0.0
    %420 = vmatprep.subr.mxu0 0.0
    %421 = vmatpush2.msra.mxu0 0.0
    %422 = vmatprep.subr.mxu0 0.0
    %423 = vmatpush2.msra.mxu0 0.0
    %424 = vmatprep.subr.mxu0 0.0
    %425 = vmatpush2.msra.mxu0 0.0
    %426 = vmatprep.subr.mxu0 0.0
    %427 = vmatpush2.msra.mxu0 0.0
    %428 = vmatprep.subr.mxu0 0.0
    %429 = vmatpush2.msra.mxu0 0.0
    %430 = vmatprep.subr.mxu0 0.0
    %431 = vmatpush2.msra.mxu0 0.0
    %432 = vmatprep.subr.mxu0 0.0
    %433 = vmatpush2.msra.mxu0 0.0
    %434 = vmatprep.subr.mxu0 0.0
    %435 = vmatpush2.msra.mxu0 0.0
    %436 = vmatprep.subr.mxu0 0.0
    %437 = vmatpush2.msra.mxu0 0.0
    %438 = vmatprep.subr.mxu0 0.0
    %439 = vmatpush2.msra.mxu0 0.0
    %440 = vmatprep.subr.mxu0 0.0
    %441 = vmatpush2.msra.mxu0 0.0
    %442 = vmatprep.subr.mxu0 0.0
    %443 = vmatpush2.msra.mxu0 0.0
    %444 = vmatprep.subr.mxu0 0.0
    %445 = vmatpush2.msra.mxu0 0.0
    %446 = vmatprep.subr.mxu0 0.0
    %447 = vmatpush2.msra.mxu0 0.0
    %448 = vmatprep.mubr.f32.mxu0 0.0
    %449 = vmatmul.mubr.f32.gmra.mxu0 %v382
    %v450 = vpop.f32.mrf.mxu0
    %v451 = vadd.f32 0.0, %v450
    %v452 = vpop.f32.mrf.mxu0
    %v453 = vadd.f32 0.0, %v452
    %454 = vdwg.mxu0
    %v455 = vadd.f32 %v217, %v451
    %v456 = vadd.f32 %v219, %v453
    %v457 = vxor.u32 %v455, 2147483648
    %v458 = vxor.u32 %v456, 2147483648
    %v459 = vmul.f32 %v457, 1.442695
    %v460 = vpow.pop %v459
    %v461 = vmul.f32 %v458, 1.442695
    %v462 = vpow.pop %v461
    %v463 = vadd.f32 %v460, 1.0
    %v464 = vadd.f32 %v462, 1.0
    %v465 = vrcp.pop %v463
    %v466 = vmul.f32 1.0, %v465
    %v467 = vrcp.pop %v464
    %v468 = vmul.f32 1.0, %v467
    %v469 = vtanh.pop %v456
    %v470 = vmul.f32 %v466, %v373
    %472 = vrot.lane.b32.xlu0 %v469, 64
    %v473 = vpop.permute.xlu0 %472
    %v475 = vmul.f32 %v466, %v473
    %477 = vrot.lane.b32.xlu0 %v475, 64
    %v478 = vpop.permute.xlu0 %477
    %v480 = vadd.f32 %v470, %v478
    %v481 = vtanh.pop %v480
    %483 = vrot.lane.b32.xlu0 %v481, 64
    %v484 = vpop.permute.xlu0 %483
    %v486 = vmul.f32 %v468, %v484
    %487 = vst.msk [vmem:[#allocation2 + $0x8] sm:$0xff] %vm273, %v486
    %v489 = vsel %vm273, %v486, 0
    %491 = vmatprep.subr.mxu0 0.0
    %492 = vmatpush1.msra.mxu0 0.0
    %493 = vmatprep.subr.mxu0 0.0
    %494 = vmatpush1.msra.mxu0 0.0
    %495 = vmatprep.subr.mxu0 0.0
    %496 = vmatpush1.msra.mxu0 0.0
    %497 = vmatprep.subr.mxu0 0.0
    %498 = vmatpush1.msra.mxu0 0.0
    %499 = vmatprep.subr.mxu0 0.0
    %500 = vmatpush1.msra.mxu0 0.0
    %501 = vmatprep.subr.mxu0 0.0
    %502 = vmatpush1.msra.mxu0 0.0
    %503 = vmatprep.subr.mxu0 0.0
    %504 = vmatpush1.msra.mxu0 0.0
    %505 = vmatprep.subr.mxu0 0.0
    %506 = vmatpush1.msra.mxu0 0.0
    %507 = vmatprep.subr.mxu0 %v272
    %508 = vmatpush1.msra.mxu0 %v271
    %509 = vmatprep.subr.mxu0 %v270
    %510 = vmatpush1.msra.mxu0 %v269
    %511 = vmatprep.subr.mxu0 %v268
    %512 = vmatpush1.msra.mxu0 %v267
    %513 = vmatprep.subr.mxu0 %v266
    %514 = vmatpush1.msra.mxu0 %v265
    %515 = vmatprep.subr.mxu0 %v264
    %516 = vmatpush1.msra.mxu0 %v263
    %517 = vmatprep.subr.mxu0 %v262
    %518 = vmatpush1.msra.mxu0 %v261
    %519 = vmatprep.subr.mxu0 %v260
    %520 = vmatpush1.msra.mxu0 %v259
    %521 = vmatprep.subr.mxu0 %v258
    %522 = vmatpush1.msra.mxu0 %v257
    %523 = vmatprep.subr.mxu0 0.0
    %524 = vmatpush2.msra.mxu0 0.0
    %525 = vmatprep.subr.mxu0 0.0
    %526 = vmatpush2.msra.mxu0 0.0
    %527 = vmatprep.subr.mxu0 0.0
    %528 = vmatpush2.msra.mxu0 0.0
    %529 = vmatprep.subr.mxu0 0.0
    %530 = vmatpush2.msra.mxu0 0.0
    %531 = vmatprep.subr.mxu0 0.0
    %532 = vmatpush2.msra.mxu0 0.0
    %533 = vmatprep.subr.mxu0 0.0
    %534 = vmatpush2.msra.mxu0 0.0
    %535 = vmatprep.subr.mxu0 0.0
    %536 = vmatpush2.msra.mxu0 0.0
    %537 = vmatprep.subr.mxu0 0.0
    %538 = vmatpush2.msra.mxu0 0.0
    %539 = vmatprep.subr.mxu0 0.0
    %540 = vmatpush2.msra.mxu0 0.0
    %541 = vmatprep.subr.mxu0 0.0
    %542 = vmatpush2.msra.mxu0 0.0
    %543 = vmatprep.subr.mxu0 0.0
    %544 = vmatpush2.msra.mxu0 0.0
    %545 = vmatprep.subr.mxu0 0.0
    %546 = vmatpush2.msra.mxu0 0.0
    %547 = vmatprep.subr.mxu0 0.0
    %548 = vmatpush2.msra.mxu0 0.0
    %549 = vmatprep.subr.mxu0 0.0
    %550 = vmatpush2.msra.mxu0 0.0
    %551 = vmatprep.subr.mxu0 0.0
    %552 = vmatpush2.msra.mxu0 0.0
    %553 = vmatprep.subr.mxu0 0.0
    %554 = vmatpush2.msra.mxu0 0.0
    %555 = vmatprep.mubr.f32.mxu0 0.0
    %556 = vmatmul.mubr.f32.gmra.mxu0 %v489
    %v557 = vpop.f32.mrf.mxu0
    %v558 = vadd.f32 0.0, %v557
    %v559 = vpop.f32.mrf.mxu0
    %v560 = vadd.f32 0.0, %v559
    %561 = vdwg.mxu0
    %v562 = vadd.f32 %v223, %v558
    %v563 = vadd.f32 %v225, %v560
    %v564 = vxor.u32 %v562, 2147483648
    %v565 = vxor.u32 %v563, 2147483648
    %v566 = vmul.f32 %v564, 1.442695
    %v567 = vpow.pop %v566
    %v568 = vmul.f32 %v565, 1.442695
    %v569 = vpow.pop %v568
    %v570 = vadd.f32 %v567, 1.0
    %v571 = vadd.f32 %v569, 1.0
    %v572 = vrcp.pop %v570
    %v573 = vmul.f32 1.0, %v572
    %v574 = vrcp.pop %v571
    %v575 = vmul.f32 1.0, %v574
    %v576 = vtanh.pop %v563
    %v577 = vmul.f32 %v573, %v480
    %579 = vrot.lane.b32.xlu0 %v576, 64
    %v580 = vpop.permute.xlu0 %579
    %v582 = vmul.f32 %v573, %v580
    %584 = vrot.lane.b32.xlu0 %v582, 64
    %v585 = vpop.permute.xlu0 %584
    %v587 = vadd.f32 %v577, %v585
    %v588 = vtanh.pop %v587
    %590 = vrot.lane.b32.xlu0 %v588, 64
    %v591 = vpop.permute.xlu0 %590
    %v593 = vmul.f32 %v575, %v591
    %594 = vst.msk [vmem:[#allocation2 + $0x10] sm:$0xff] %vm273, %v593
    %v596 = vsel %vm273, %v593, 0
    %598 = vmatprep.subr.mxu0 0.0
    %599 = vmatpush1.msra.mxu0 0.0
    %600 = vmatprep.subr.mxu0 0.0
    %601 = vmatpush1.msra.mxu0 0.0
    %602 = vmatprep.subr.mxu0 0.0
    %603 = vmatpush1.msra.mxu0 0.0
    %604 = vmatprep.subr.mxu0 0.0
    %605 = vmatpush1.msra.mxu0 0.0
    %606 = vmatprep.subr.mxu0 0.0
    %607 = vmatpush1.msra.mxu0 0.0
    %608 = vmatprep.subr.mxu0 0.0
    %609 = vmatpush1.msra.mxu0 0.0
    %610 = vmatprep.subr.mxu0 0.0
    %611 = vmatpush1.msra.mxu0 0.0
    %612 = vmatprep.subr.mxu0 0.0
    %613 = vmatpush1.msra.mxu0 0.0
    %614 = vmatprep.subr.mxu0 %v272
    %615 = vmatpush1.msra.mxu0 %v271
    %616 = vmatprep.subr.mxu0 %v270
    %617 = vmatpush1.msra.mxu0 %v269
    %618 = vmatprep.subr.mxu0 %v268
    %619 = vmatpush1.msra.mxu0 %v267
    %620 = vmatprep.subr.mxu0 %v266
    %621 = vmatpush1.msra.mxu0 %v265
    %622 = vmatprep.subr.mxu0 %v264
    %623 = vmatpush1.msra.mxu0 %v263
    %624 = vmatprep.subr.mxu0 %v262
    %625 = vmatpush1.msra.mxu0 %v261
    %626 = vmatprep.subr.mxu0 %v260
    %627 = vmatpush1.msra.mxu0 %v259
    %628 = vmatprep.subr.mxu0 %v258
    %629 = vmatpush1.msra.mxu0 %v257
    %630 = vmatprep.subr.mxu0 0.0
    %631 = vmatpush2.msra.mxu0 0.0
    %632 = vmatprep.subr.mxu0 0.0
    %633 = vmatpush2.msra.mxu0 0.0
    %634 = vmatprep.subr.mxu0 0.0
    %635 = vmatpush2.msra.mxu0 0.0
    %636 = vmatprep.subr.mxu0 0.0
    %637 = vmatpush2.msra.mxu0 0.0
    %638 = vmatprep.subr.mxu0 0.0
    %639 = vmatpush2.msra.mxu0 0.0
    %640 = vmatprep.subr.mxu0 0.0
    %641 = vmatpush2.msra.mxu0 0.0
    %642 = vmatprep.subr.mxu0 0.0
    %643 = vmatpush2.msra.mxu0 0.0
    %644 = vmatprep.subr.mxu0 0.0
    %645 = vmatpush2.msra.mxu0 0.0
    %646 = vmatprep.subr.mxu0 0.0
    %647 = vmatpush2.msra.mxu0 0.0
    %648 = vmatprep.subr.mxu0 0.0
    %649 = vmatpush2.msra.mxu0 0.0
    %650 = vmatprep.subr.mxu0 0.0
    %651 = vmatpush2.msra.mxu0 0.0
    %652 = vmatprep.subr.mxu0 0.0
    %653 = vmatpush2.msra.mxu0 0.0
    %654 = vmatprep.subr.mxu0 0.0
    %655 = vmatpush2.msra.mxu0 0.0
    %656 = vmatprep.subr.mxu0 0.0
    %657 = vmatpush2.msra.mxu0 0.0
    %658 = vmatprep.subr.mxu0 0.0
    %659 = vmatpush2.msra.mxu0 0.0
    %660 = vmatprep.subr.mxu0 0.0
    %661 = vmatpush2.msra.mxu0 0.0
    %662 = vmatprep.mubr.f32.mxu0 0.0
    %663 = vmatmul.mubr.f32.gmra.mxu0 %v596
    %v664 = vpop.f32.mrf.mxu0
    %v665 = vadd.f32 0.0, %v664
    %v666 = vpop.f32.mrf.mxu0
    %v667 = vadd.f32 0.0, %v666
    %668 = vdwg.mxu0
    %v669 = vadd.f32 %v229, %v665
    %v670 = vadd.f32 %v231, %v667
    %v671 = vxor.u32 %v669, 2147483648
    %v672 = vxor.u32 %v670, 2147483648
    %v673 = vmul.f32 %v671, 1.442695
    %v674 = vpow.pop %v673
    %v675 = vmul.f32 %v672, 1.442695
    %v676 = vpow.pop %v675
    %v677 = vadd.f32 %v674, 1.0
    %v678 = vadd.f32 %v676, 1.0
    %v679 = vrcp.pop %v677
    %v680 = vmul.f32 1.0, %v679
    %v681 = vrcp.pop %v678
    %v682 = vmul.f32 1.0, %v681
    %v683 = vtanh.pop %v670
    %v684 = vmul.f32 %v680, %v587
    %686 = vrot.lane.b32.xlu0 %v683, 64
    %v687 = vpop.permute.xlu0 %686
    %v689 = vmul.f32 %v680, %v687
    %691 = vrot.lane.b32.xlu0 %v689, 64
    %v692 = vpop.permute.xlu0 %691
    %v694 = vadd.f32 %v684, %v692
    %v695 = vtanh.pop %v694
    %697 = vrot.lane.b32.xlu0 %v695, 64
    %v698 = vpop.permute.xlu0 %697
    %v700 = vmul.f32 %v682, %v698
    %701 = vst.msk [vmem:[#allocation2 + $0x18] sm:$0xff] %vm273, %v700
    %v703 = vsel %vm273, %v700, 0
    %705 = vmatprep.subr.mxu0 0.0
    %706 = vmatpush1.msra.mxu0 0.0
    %707 = vmatprep.subr.mxu0 0.0
    %708 = vmatpush1.msra.mxu0 0.0
    %709 = vmatprep.subr.mxu0 0.0
    %710 = vmatpush1.msra.mxu0 0.0
    %711 = vmatprep.subr.mxu0 0.0
    %712 = vmatpush1.msra.mxu0 0.0
    %713 = vmatprep.subr.mxu0 0.0
    %714 = vmatpush1.msra.mxu0 0.0
    %715 = vmatprep.subr.mxu0 0.0
    %716 = vmatpush1.msra.mxu0 0.0
    %717 = vmatprep.subr.mxu0 0.0
    %718 = vmatpush1.msra.mxu0 0.0
    %719 = vmatprep.subr.mxu0 0.0
    %720 = vmatpush1.msra.mxu0 0.0
    %721 = vmatprep.subr.mxu0 %v272
    %722 = vmatpush1.msra.mxu0 %v271
    %723 = vmatprep.subr.mxu0 %v270
    %724 = vmatpush1.msra.mxu0 %v269
    %725 = vmatprep.subr.mxu0 %v268
    %726 = vmatpush1.msra.mxu0 %v267
    %727 = vmatprep.subr.mxu0 %v266
    %728 = vmatpush1.msra.mxu0 %v265
    %729 = vmatprep.subr.mxu0 %v264
    %730 = vmatpush1.msra.mxu0 %v263
    %731 = vmatprep.subr.mxu0 %v262
    %732 = vmatpush1.msra.mxu0 %v261
    %733 = vmatprep.subr.mxu0 %v260
    %734 = vmatpush1.msra.mxu0 %v259
    %735 = vmatprep.subr.mxu0 %v258
    %736 = vmatpush1.msra.mxu0 %v257
    %737 = vmatprep.subr.mxu0 0.0
    %738 = vmatpush2.msra.mxu0 0.0
    %739 = vmatprep.subr.mxu0 0.0
    %740 = vmatpush2.msra.mxu0 0.0
    %741 = vmatprep.subr.mxu0 0.0
    %742 = vmatpush2.msra.mxu0 0.0
    %743 = vmatprep.subr.mxu0 0.0
    %744 = vmatpush2.msra.mxu0 0.0
    %745 = vmatprep.subr.mxu0 0.0
    %746 = vmatpush2.msra.mxu0 0.0
    %747 = vmatprep.subr.mxu0 0.0
    %748 = vmatpush2.msra.mxu0 0.0
    %749 = vmatprep.subr.mxu0 0.0
    %750 = vmatpush2.msra.mxu0 0.0
    %751 = vmatprep.subr.mxu0 0.0
    %752 = vmatpush2.msra.mxu0 0.0
    %753 = vmatprep.subr.mxu0 0.0
    %754 = vmatpush2.msra.mxu0 0.0
    %755 = vmatprep.subr.mxu0 0.0
    %756 = vmatpush2.msra.mxu0 0.0
    %757 = vmatprep.subr.mxu0 0.0
    %758 = vmatpush2.msra.mxu0 0.0
    %759 = vmatprep.subr.mxu0 0.0
    %760 = vmatpush2.msra.mxu0 0.0
    %761 = vmatprep.subr.mxu0 0.0
    %762 = vmatpush2.msra.mxu0 0.0
    %763 = vmatprep.subr.mxu0 0.0
    %764 = vmatpush2.msra.mxu0 0.0
    %765 = vmatprep.subr.mxu0 0.0
    %766 = vmatpush2.msra.mxu0 0.0
    %767 = vmatprep.subr.mxu0 0.0
    %768 = vmatpush2.msra.mxu0 0.0
    %769 = vmatprep.mubr.f32.mxu0 0.0
    %770 = vmatmul.mubr.f32.gmra.mxu0 %v703
    %v771 = vpop.f32.mrf.mxu0
    %v772 = vadd.f32 0.0, %v771
    %v773 = vpop.f32.mrf.mxu0
    %v774 = vadd.f32 0.0, %v773
    %775 = vdwg.mxu0
    %v776 = vadd.f32 %v235, %v772
    %v777 = vadd.f32 %v237, %v774
    %v778 = vxor.u32 %v776, 2147483648
    %v779 = vxor.u32 %v777, 2147483648
    %v780 = vmul.f32 %v778, 1.442695
    %v781 = vpow.pop %v780
    %v782 = vmul.f32 %v779, 1.442695
    %v783 = vpow.pop %v782
    %v784 = vadd.f32 %v781, 1.0
    %v785 = vadd.f32 %v783, 1.0
    %v786 = vrcp.pop %v784
    %v787 = vmul.f32 1.0, %v786
    %v788 = vrcp.pop %v785
    %v789 = vmul.f32 1.0, %v788
    %v790 = vtanh.pop %v777
    %v791 = vmul.f32 %v787, %v694
    %793 = vrot.lane.b32.xlu0 %v790, 64
    %v794 = vpop.permute.xlu0 %793
    %v796 = vmul.f32 %v787, %v794
    %798 = vrot.lane.b32.xlu0 %v796, 64
    %v799 = vpop.permute.xlu0 %798
    %v801 = vadd.f32 %v791, %v799
    %v802 = vtanh.pop %v801
    %804 = vrot.lane.b32.xlu0 %v802, 64
    %v805 = vpop.permute.xlu0 %804
    %v807 = vmul.f32 %v789, %v805
    %808 = vst.msk [vmem:[#allocation2 + $0x20] sm:$0xff] %vm273, %v807
    %v810 = vsel %vm273, %v807, 0
    %812 = vmatprep.subr.mxu0 0.0
    %813 = vmatpush1.msra.mxu0 0.0
    %814 = vmatprep.subr.mxu0 0.0
    %815 = vmatpush1.msra.mxu0 0.0
    %816 = vmatprep.subr.mxu0 0.0
    %817 = vmatpush1.msra.mxu0 0.0
    %818 = vmatprep.subr.mxu0 0.0
    %819 = vmatpush1.msra.mxu0 0.0
    %820 = vmatprep.subr.mxu0 0.0
    %821 = vmatpush1.msra.mxu0 0.0
    %822 = vmatprep.subr.mxu0 0.0
    %823 = vmatpush1.msra.mxu0 0.0
    %824 = vmatprep.subr.mxu0 0.0
    %825 = vmatpush1.msra.mxu0 0.0
    %826 = vmatprep.subr.mxu0 0.0
    %827 = vmatpush1.msra.mxu0 0.0
    %828 = vmatprep.subr.mxu0 %v272
    %829 = vmatpush1.msra.mxu0 %v271
    %830 = vmatprep.subr.mxu0 %v270
    %831 = vmatpush1.msra.mxu0 %v269
    %832 = vmatprep.subr.mxu0 %v268
    %833 = vmatpush1.msra.mxu0 %v267
    %834 = vmatprep.subr.mxu0 %v266
    %835 = vmatpush1.msra.mxu0 %v265
    %836 = vmatprep.subr.mxu0 %v264
    %837 = vmatpush1.msra.mxu0 %v263
    %838 = vmatprep.subr.mxu0 %v262
    %839 = vmatpush1.msra.mxu0 %v261
    %840 = vmatprep.subr.mxu0 %v260
    %841 = vmatpush1.msra.mxu0 %v259
    %842 = vmatprep.subr.mxu0 %v258
    %843 = vmatpush1.msra.mxu0 %v257
    %844 = vmatprep.subr.mxu0 0.0
    %845 = vmatpush2.msra.mxu0 0.0
    %846 = vmatprep.subr.mxu0 0.0
    %847 = vmatpush2.msra.mxu0 0.0
    %848 = vmatprep.subr.mxu0 0.0
    %849 = vmatpush2.msra.mxu0 0.0
    %850 = vmatprep.subr.mxu0 0.0
    %851 = vmatpush2.msra.mxu0 0.0
    %852 = vmatprep.subr.mxu0 0.0
    %853 = vmatpush2.msra.mxu0 0.0
    %854 = vmatprep.subr.mxu0 0.0
    %855 = vmatpush2.msra.mxu0 0.0
    %856 = vmatprep.subr.mxu0 0.0
    %857 = vmatpush2.msra.mxu0 0.0
    %858 = vmatprep.subr.mxu0 0.0
    %859 = vmatpush2.msra.mxu0 0.0
    %860 = vmatprep.subr.mxu0 0.0
    %861 = vmatpush2.msra.mxu0 0.0
    %862 = vmatprep.subr.mxu0 0.0
    %863 = vmatpush2.msra.mxu0 0.0
    %864 = vmatprep.subr.mxu0 0.0
    %865 = vmatpush2.msra.mxu0 0.0
    %866 = vmatprep.subr.mxu0 0.0
    %867 = vmatpush2.msra.mxu0 0.0
    %868 = vmatprep.subr.mxu0 0.0
    %869 = vmatpush2.msra.mxu0 0.0
    %870 = vmatprep.subr.mxu0 0.0
    %871 = vmatpush2.msra.mxu0 0.0
    %872 = vmatprep.subr.mxu0 0.0
    %873 = vmatpush2.msra.mxu0 0.0
    %874 = vmatprep.subr.mxu0 0.0
    %875 = vmatpush2.msra.mxu0 0.0
    %876 = vmatprep.mubr.f32.mxu0 0.0
    %877 = vmatmul.mubr.f32.gmra.mxu0 %v810
    %v878 = vpop.f32.mrf.mxu0
    %v879 = vadd.f32 0.0, %v878
    %v880 = vpop.f32.mrf.mxu0
    %v881 = vadd.f32 0.0, %v880
    %882 = vdwg.mxu0
    %v883 = vadd.f32 %v241, %v879
    %v884 = vadd.f32 %v243, %v881
    %v885 = vxor.u32 %v883, 2147483648
    %v886 = vxor.u32 %v884, 2147483648
    %v887 = vmul.f32 %v885, 1.442695
    %v888 = vpow.pop %v887
    %v889 = vmul.f32 %v886, 1.442695
    %v890 = vpow.pop %v889
    %v891 = vadd.f32 %v888, 1.0
    %v892 = vadd.f32 %v890, 1.0
    %v893 = vrcp.pop %v891
    %v894 = vmul.f32 1.0, %v893
    %v895 = vrcp.pop %v892
    %v896 = vmul.f32 1.0, %v895
    %v897 = vtanh.pop %v884
    %v898 = vmul.f32 %v894, %v801
    %900 = vrot.lane.b32.xlu0 %v897, 64
    %v901 = vpop.permute.xlu0 %900
    %v903 = vmul.f32 %v894, %v901
    %905 = vrot.lane.b32.xlu0 %v903, 64
    %v906 = vpop.permute.xlu0 %905
    %v908 = vadd.f32 %v898, %v906
    %v909 = vtanh.pop %v908
    %911 = vrot.lane.b32.xlu0 %v909, 64
    %v912 = vpop.permute.xlu0 %911
    %v914 = vmul.f32 %v896, %v912
    %915 = vst.msk [vmem:[#allocation2 + $0x28] sm:$0xff] %vm273, %v914
    %v917 = vsel %vm273, %v914, 0
    %919 = vmatprep.subr.mxu0 0.0
    %920 = vmatpush1.msra.mxu0 0.0
    %921 = vmatprep.subr.mxu0 0.0
    %922 = vmatpush1.msra.mxu0 0.0
    %923 = vmatprep.subr.mxu0 0.0
    %924 = vmatpush1.msra.mxu0 0.0
    %925 = vmatprep.subr.mxu0 0.0
    %926 = vmatpush1.msra.mxu0 0.0
    %927 = vmatprep.subr.mxu0 0.0
    %928 = vmatpush1.msra.mxu0 0.0
    %929 = vmatprep.subr.mxu0 0.0
    %930 = vmatpush1.msra.mxu0 0.0
    %931 = vmatprep.subr.mxu0 0.0
    %932 = vmatpush1.msra.mxu0 0.0
    %933 = vmatprep.subr.mxu0 0.0
    %934 = vmatpush1.msra.mxu0 0.0
    %935 = vmatprep.subr.mxu0 %v272
    %936 = vmatpush1.msra.mxu0 %v271
    %937 = vmatprep.subr.mxu0 %v270
    %938 = vmatpush1.msra.mxu0 %v269
    %939 = vmatprep.subr.mxu0 %v268
    %940 = vmatpush1.msra.mxu0 %v267
    %941 = vmatprep.subr.mxu0 %v266
    %942 = vmatpush1.msra.mxu0 %v265
    %943 = vmatprep.subr.mxu0 %v264
    %944 = vmatpush1.msra.mxu0 %v263
    %945 = vmatprep.subr.mxu0 %v262
    %946 = vmatpush1.msra.mxu0 %v261
    %947 = vmatprep.subr.mxu0 %v260
    %948 = vmatpush1.msra.mxu0 %v259
    %949 = vmatprep.subr.mxu0 %v258
    %950 = vmatpush1.msra.mxu0 %v257
    %951 = vmatprep.subr.mxu0 0.0
    %952 = vmatpush2.msra.mxu0 0.0
    %953 = vmatprep.subr.mxu0 0.0
    %954 = vmatpush2.msra.mxu0 0.0
    %955 = vmatprep.subr.mxu0 0.0
    %956 = vmatpush2.msra.mxu0 0.0
    %957 = vmatprep.subr.mxu0 0.0
    %958 = vmatpush2.msra.mxu0 0.0
    %959 = vmatprep.subr.mxu0 0.0
    %960 = vmatpush2.msra.mxu0 0.0
    %961 = vmatprep.subr.mxu0 0.0
    %962 = vmatpush2.msra.mxu0 0.0
    %963 = vmatprep.subr.mxu0 0.0
    %964 = vmatpush2.msra.mxu0 0.0
    %965 = vmatprep.subr.mxu0 0.0
    %966 = vmatpush2.msra.mxu0 0.0
    %967 = vmatprep.subr.mxu0 0.0
    %968 = vmatpush2.msra.mxu0 0.0
    %969 = vmatprep.subr.mxu0 0.0
    %970 = vmatpush2.msra.mxu0 0.0
    %971 = vmatprep.subr.mxu0 0.0
    %972 = vmatpush2.msra.mxu0 0.0
    %973 = vmatprep.subr.mxu0 0.0
    %974 = vmatpush2.msra.mxu0 0.0
    %975 = vmatprep.subr.mxu0 0.0
    %976 = vmatpush2.msra.mxu0 0.0
    %977 = vmatprep.subr.mxu0 0.0
    %978 = vmatpush2.msra.mxu0 0.0
    %979 = vmatprep.subr.mxu0 0.0
    %980 = vmatpush2.msra.mxu0 0.0
    %981 = vmatprep.subr.mxu0 0.0
    %982 = vmatpush2.msra.mxu0 0.0
    %983 = vmatprep.mubr.f32.mxu0 0.0
    %984 = vmatmul.mubr.f32.gmra.mxu0 %v917
    %v985 = vpop.f32.mrf.mxu0
    %v986 = vadd.f32 0.0, %v985
    %v987 = vpop.f32.mrf.mxu0
    %v988 = vadd.f32 0.0, %v987
    %989 = vdwg.mxu0
    %v990 = vadd.f32 %v247, %v986
    %v991 = vadd.f32 %v249, %v988
    %v992 = vxor.u32 %v990, 2147483648
    %v993 = vxor.u32 %v991, 2147483648
    %v994 = vmul.f32 %v992, 1.442695
    %v995 = vpow.pop %v994
    %v996 = vmul.f32 %v993, 1.442695
    %v997 = vpow.pop %v996
    %v998 = vadd.f32 %v995, 1.0
    %v999 = vadd.f32 %v997, 1.0
    %v1000 = vrcp.pop %v998
    %v1001 = vmul.f32 1.0, %v1000
    %v1002 = vrcp.pop %v999
    %v1003 = vmul.f32 1.0, %v1002
    %v1004 = vtanh.pop %v991
    %v1005 = vmul.f32 %v1001, %v908
    %1007 = vrot.lane.b32.xlu0 %v1004, 64
    %v1008 = vpop.permute.xlu0 %1007
    %v1010 = vmul.f32 %v1001, %v1008
    %1012 = vrot.lane.b32.xlu0 %v1010, 64
    %v1013 = vpop.permute.xlu0 %1012
    %v1015 = vadd.f32 %v1005, %v1013
    %v1016 = vtanh.pop %v1015
    %1018 = vrot.lane.b32.xlu0 %v1016, 64
    %v1019 = vpop.permute.xlu0 %1018
    %v1021 = vmul.f32 %v1003, %v1019
    %1022 = vst.msk [vmem:[#allocation2 + $0x30] sm:$0xff] %vm273, %v1021
    %v1024 = vsel %vm273, %v1021, 0
    %1026 = vmatprep.subr.mxu0 0.0
    %1027 = vmatpush1.msra.mxu0 0.0
    %1028 = vmatprep.subr.mxu0 0.0
    %1029 = vmatpush1.msra.mxu0 0.0
    %1030 = vmatprep.subr.mxu0 0.0
    %1031 = vmatpush1.msra.mxu0 0.0
    %1032 = vmatprep.subr.mxu0 0.0
    %1033 = vmatpush1.msra.mxu0 0.0
    %1034 = vmatprep.subr.mxu0 0.0
    %1035 = vmatpush1.msra.mxu0 0.0
    %1036 = vmatprep.subr.mxu0 0.0
    %1037 = vmatpush1.msra.mxu0 0.0
    %1038 = vmatprep.subr.mxu0 0.0
    %1039 = vmatpush1.msra.mxu0 0.0
    %1040 = vmatprep.subr.mxu0 0.0
    %1041 = vmatpush1.msra.mxu0 0.0
    %1042 = vmatprep.subr.mxu0 %v272
    %1043 = vmatpush1.msra.mxu0 %v271
    %1044 = vmatprep.subr.mxu0 %v270
    %1045 = vmatpush1.msra.mxu0 %v269
    %1046 = vmatprep.subr.mxu0 %v268
    %1047 = vmatpush1.msra.mxu0 %v267
    %1048 = vmatprep.subr.mxu0 %v266
    %1049 = vmatpush1.msra.mxu0 %v265
    %1050 = vmatprep.subr.mxu0 %v264
    %1051 = vmatpush1.msra.mxu0 %v263
    %1052 = vmatprep.subr.mxu0 %v262
    %1053 = vmatpush1.msra.mxu0 %v261
    %1054 = vmatprep.subr.mxu0 %v260
    %1055 = vmatpush1.msra.mxu0 %v259
    %1056 = vmatprep.subr.mxu0 %v258
    %1057 = vmatpush1.msra.mxu0 %v257
    %1058 = vmatprep.subr.mxu0 0.0
    %1059 = vmatpush2.msra.mxu0 0.0
    %1060 = vmatprep.subr.mxu0 0.0
    %1061 = vmatpush2.msra.mxu0 0.0
    %1062 = vmatprep.subr.mxu0 0.0
    %1063 = vmatpush2.msra.mxu0 0.0
    %1064 = vmatprep.subr.mxu0 0.0
    %1065 = vmatpush2.msra.mxu0 0.0
    %1066 = vmatprep.subr.mxu0 0.0
    %1067 = vmatpush2.msra.mxu0 0.0
    %1068 = vmatprep.subr.mxu0 0.0
    %1069 = vmatpush2.msra.mxu0 0.0
    %1070 = vmatprep.subr.mxu0 0.0
    %1071 = vmatpush2.msra.mxu0 0.0
    %1072 = vmatprep.subr.mxu0 0.0
    %1073 = vmatpush2.msra.mxu0 0.0
    %1074 = vmatprep.subr.mxu0 0.0
    %1075 = vmatpush2.msra.mxu0 0.0
    %1076 = vmatprep.subr.mxu0 0.0
    %1077 = vmatpush2.msra.mxu0 0.0
    %1078 = vmatprep.subr.mxu0 0.0
    %1079 = vmatpush2.msra.mxu0 0.0
    %1080 = vmatprep.subr.mxu0 0.0
    %1081 = vmatpush2.msra.mxu0 0.0
    %1082 = vmatprep.subr.mxu0 0.0
    %1083 = vmatpush2.msra.mxu0 0.0
    %1084 = vmatprep.subr.mxu0 0.0
    %1085 = vmatpush2.msra.mxu0 0.0
    %1086 = vmatprep.subr.mxu0 0.0
    %1087 = vmatpush2.msra.mxu0 0.0
    %1088 = vmatprep.subr.mxu0 0.0
    %1089 = vmatpush2.msra.mxu0 0.0
    %1090 = vmatprep.mubr.f32.mxu0 0.0
    %1091 = vmatmul.mubr.f32.gmra.mxu0 %v1024
    %v1092 = vpop.f32.mrf.mxu0
    %v1093 = vadd.f32 0.0, %v1092
    %v1094 = vpop.f32.mrf.mxu0
    %v1095 = vadd.f32 0.0, %v1094
    %1096 = vdwg.mxu0
    %v1097 = vadd.f32 %v253, %v1093
    %v1098 = vadd.f32 %v255, %v1095
    %v1099 = vxor.u32 %v1097, 2147483648
    %v1100 = vxor.u32 %v1098, 2147483648
    %v1101 = vmul.f32 %v1099, 1.442695
    %v1102 = vpow.pop %v1101
    %v1103 = vmul.f32 %v1100, 1.442695
    %v1104 = vpow.pop %v1103
    %v1105 = vadd.f32 %v1102, 1.0
    %v1106 = vadd.f32 %v1104, 1.0
    %v1107 = vrcp.pop %v1105
    %v1108 = vmul.f32 1.0, %v1107
    %v1109 = vrcp.pop %v1106
    %v1110 = vmul.f32 1.0, %v1109
    %v1111 = vtanh.pop %v1098
    %v1112 = vmul.f32 %v1108, %v1015
    %1114 = vrot.lane.b32.xlu0 %v1111, 64
    %v1115 = vpop.permute.xlu0 %1114
    %v1117 = vmul.f32 %v1108, %v1115
    %1119 = vrot.lane.b32.xlu0 %v1117, 64
    %v1120 = vpop.permute.xlu0 %1119
    %v1122 = vadd.f32 %v1112, %v1120
    %v1123 = vtanh.pop %v1122
    %1125 = vrot.lane.b32.xlu0 %v1123, 64
    %v1126 = vpop.permute.xlu0 %1125
    %v1128 = vmul.f32 %v1110, %v1126
    %1129 = vst.msk [vmem:[#allocation2 + $0x38] sm:$0xff] %vm273, %v1128
    %v1130 = vld [vmem:[#allocation2] sm:$0xff]
    %v1131 = vld [vmem:[#allocation2 + $0x8] sm:$0xff]
    %v1132 = vld [vmem:[#allocation2 + $0x10] sm:$0xff]
    %v1133 = vld [vmem:[#allocation2 + $0x18] sm:$0xff]
    %v1134 = vld [vmem:[#allocation2 + $0x20] sm:$0xff]
    %v1135 = vld [vmem:[#allocation2 + $0x28] sm:$0xff]
    %v1136 = vld [vmem:[#allocation2 + $0x30] sm:$0xff]
    %v1137 = vld [vmem:[#allocation2 + $0x38] sm:$0xff]
    %v1138 = vld [vmem:[#allocation8] sm:$0xff]
    %v1139 = vld [vmem:[#allocation8 + $0x8] sm:$0xff]
    %v1140 = vld [vmem:[#allocation8 + $0x10] sm:$0xff]
    %v1141 = vld [vmem:[#allocation8 + $0x18] sm:$0xff]
    %v1142 = vld [vmem:[#allocation8 + $0x20] sm:$0xff]
    %v1143 = vld [vmem:[#allocation8 + $0x28] sm:$0xff]
    %v1144 = vld [vmem:[#allocation8 + $0x30] sm:$0xff]
    %v1145 = vld [vmem:[#allocation8 + $0x38] sm:$0xff]
    %v1146 = vld [vmem:[#allocation8 + $0x40] sm:$0xff]
    %v1147 = vld [vmem:[#allocation8 + $0x48] sm:$0xff]
    %v1148 = vld [vmem:[#allocation8 + $0x50] sm:$0xff]
    %v1149 = vld [vmem:[#allocation8 + $0x58] sm:$0xff]
    %v1150 = vld [vmem:[#allocation8 + $0x60] sm:$0xff]
    %v1151 = vld [vmem:[#allocation8 + $0x68] sm:$0xff]
    %v1152 = vld [vmem:[#allocation8 + $0x70] sm:$0xff]
    %v1153 = vld [vmem:[#allocation8 + $0x78] sm:$0xff]
    %v1154 = vld [vmem:[%s6] sm:$0x3]
    %v1156 = vlaneseq
    %v1157 = vshrl.u32 %v1156, 7
    %v1158 = vsub.s32 0, %v1157
    %v1159 = vrot.slane %v1154, %v1158
    %v1160 = vlaneseq
    %v1161 = vshrl.u32 %v1160, 7
    %v1162 = vsub.s32 1, %v1161
    %v1163 = vrot.slane %v1154, %v1162
    %v1167 = vsel %vm273, %v1130, 0
    %v1170 = vsel %vm273, %v1131, 0
    %v1173 = vsel %vm273, %v1132, 0
    %v1176 = vsel %vm273, %v1133, 0
    %v1179 = vsel %vm273, %v1134, 0
    %v1182 = vsel %vm273, %v1135, 0
    %v1185 = vsel %vm273, %v1136, 0
    %v1188 = vsel %vm273, %v1137, 0
    %1190 = vmatprep.subr.mxu0 0.0
    %1191 = vmatpush1.msra.mxu0 0.0
    %1192 = vmatprep.subr.mxu0 0.0
    %1193 = vmatpush1.msra.mxu0 0.0
    %1194 = vmatprep.subr.mxu0 0.0
    %1195 = vmatpush1.msra.mxu0 0.0
    %1196 = vmatprep.subr.mxu0 0.0
    %1197 = vmatpush1.msra.mxu0 0.0
    %1198 = vmatprep.subr.mxu0 0.0
    %1199 = vmatpush1.msra.mxu0 0.0
    %1200 = vmatprep.subr.mxu0 0.0
    %1201 = vmatpush1.msra.mxu0 0.0
    %1202 = vmatprep.subr.mxu0 0.0
    %1203 = vmatpush1.msra.mxu0 0.0
    %1204 = vmatprep.subr.mxu0 0.0
    %1205 = vmatpush1.msra.mxu0 0.0
    %1206 = vmatprep.subr.mxu0 %v1153
    %1207 = vmatpush1.msra.mxu0 %v1152
    %1208 = vmatprep.subr.mxu0 %v1151
    %1209 = vmatpush1.msra.mxu0 %v1150
    %1210 = vmatprep.subr.mxu0 %v1149
    %1211 = vmatpush1.msra.mxu0 %v1148
    %1212 = vmatprep.subr.mxu0 %v1147
    %1213 = vmatpush1.msra.mxu0 %v1146
    %1214 = vmatprep.subr.mxu0 %v1145
    %1215 = vmatpush1.msra.mxu0 %v1144
    %1216 = vmatprep.subr.mxu0 %v1143
    %1217 = vmatpush1.msra.mxu0 %v1142
    %1218 = vmatprep.subr.mxu0 %v1141
    %1219 = vmatpush1.msra.mxu0 %v1140
    %1220 = vmatprep.subr.mxu0 %v1139
    %1221 = vmatpush1.msra.mxu0 %v1138
    %1222 = vmatprep.subr.mxu0 0.0
    %1223 = vmatpush2.msra.mxu0 0.0
    %1224 = vmatprep.subr.mxu0 0.0
    %1225 = vmatpush2.msra.mxu0 0.0
    %1226 = vmatprep.subr.mxu0 0.0
    %1227 = vmatpush2.msra.mxu0 0.0
    %1228 = vmatprep.subr.mxu0 0.0
    %1229 = vmatpush2.msra.mxu0 0.0
    %1230 = vmatprep.subr.mxu0 0.0
    %1231 = vmatpush2.msra.mxu0 0.0
    %1232 = vmatprep.subr.mxu0 0.0
    %1233 = vmatpush2.msra.mxu0 0.0
    %1234 = vmatprep.subr.mxu0 0.0
    %1235 = vmatpush2.msra.mxu0 0.0
    %1236 = vmatprep.subr.mxu0 0.0
    %1237 = vmatpush2.msra.mxu0 0.0
    %1238 = vmatprep.subr.mxu0 0.0
    %1239 = vmatpush2.msra.mxu0 0.0
    %1240 = vmatprep.subr.mxu0 0.0
    %1241 = vmatpush2.msra.mxu0 0.0
    %1242 = vmatprep.subr.mxu0 0.0
    %1243 = vmatpush2.msra.mxu0 0.0
    %1244 = vmatprep.subr.mxu0 0.0
    %1245 = vmatpush2.msra.mxu0 0.0
    %1246 = vmatprep.subr.mxu0 0.0
    %1247 = vmatpush2.msra.mxu0 0.0
    %1248 = vmatprep.subr.mxu0 0.0
    %1249 = vmatpush2.msra.mxu0 0.0
    %1250 = vmatprep.subr.mxu0 0.0
    %1251 = vmatpush2.msra.mxu0 0.0
    %1252 = vmatprep.subr.mxu0 0.0
    %1253 = vmatpush2.msra.mxu0 0.0
    %1254 = vmatprep.mubr.f32.mxu0 0.0
    %1255 = vmatmul.mubr.f32.gmra.mxu0 %v1167
    %v1256 = vpop.f32.mrf.mxu0
    %v1257 = vadd.f32 %v1159, %v1256
    %v1258 = vpop.f32.mrf.mxu0
    %v1259 = vadd.f32 %v1163, %v1258
    %1260 = vmatprep.mubr.f32.mxu0 0.0
    %1261 = vmatmul.mubr.f32.gmra.mxu0 %v1170
    %v1262 = vpop.f32.mrf.mxu0
    %v1263 = vadd.f32 %v1159, %v1262
    %v1264 = vpop.f32.mrf.mxu0
    %v1265 = vadd.f32 %v1163, %v1264
    %1266 = vmatprep.mubr.f32.mxu0 0.0
    %1267 = vmatmul.mubr.f32.gmra.mxu0 %v1173
    %v1268 = vpop.f32.mrf.mxu0
    %v1269 = vadd.f32 %v1159, %v1268
    %v1270 = vpop.f32.mrf.mxu0
    %v1271 = vadd.f32 %v1163, %v1270
    %1272 = vmatprep.mubr.f32.mxu0 0.0
    %1273 = vmatmul.mubr.f32.gmra.mxu0 %v1176
    %v1274 = vpop.f32.mrf.mxu0
    %v1275 = vadd.f32 %v1159, %v1274
    %v1276 = vpop.f32.mrf.mxu0
    %v1277 = vadd.f32 %v1163, %v1276
    %1278 = vmatprep.mubr.f32.mxu0 0.0
    %1279 = vmatmul.mubr.f32.gmra.mxu0 %v1179
    %v1280 = vpop.f32.mrf.mxu0
    %v1281 = vadd.f32 %v1159, %v1280
    %v1282 = vpop.f32.mrf.mxu0
    %v1283 = vadd.f32 %v1163, %v1282
    %1284 = vmatprep.mubr.f32.mxu0 0.0
    %1285 = vmatmul.mubr.f32.gmra.mxu0 %v1182
    %v1286 = vpop.f32.mrf.mxu0
    %v1287 = vadd.f32 %v1159, %v1286
    %v1288 = vpop.f32.mrf.mxu0
    %v1289 = vadd.f32 %v1163, %v1288
    %1290 = vmatprep.mubr.f32.mxu0 0.0
    %1291 = vmatmul.mubr.f32.gmra.mxu0 %v1185
    %v1292 = vpop.f32.mrf.mxu0
    %v1293 = vadd.f32 %v1159, %v1292
    %v1294 = vpop.f32.mrf.mxu0
    %v1295 = vadd.f32 %v1163, %v1294
    %1296 = vmatprep.mubr.f32.mxu0 0.0
    %1297 = vmatmul.mubr.f32.gmra.mxu0 %v1188
    %v1298 = vpop.f32.mrf.mxu0
    %v1299 = vadd.f32 %v1159, %v1298
    %v1300 = vpop.f32.mrf.mxu0
    %v1301 = vadd.f32 %v1163, %v1300
    %1302 = vdwg.mxu0
    %v1303 = vld [vmem:[#allocation9] sm:$0xff]
    %v1304 = vld [vmem:[#allocation9 + $0x8] sm:$0xff]
    %v1305 = vld [vmem:[#allocation9 + $0x10] sm:$0xff]
    %v1306 = vld [vmem:[#allocation9 + $0x18] sm:$0xff]
    %v1307 = vld [vmem:[#allocation9 + $0x20] sm:$0xff]
    %v1308 = vld [vmem:[#allocation9 + $0x28] sm:$0xff]
    %v1309 = vld [vmem:[#allocation9 + $0x30] sm:$0xff]
    %v1310 = vld [vmem:[#allocation9 + $0x38] sm:$0xff]
    %v1311 = vld [vmem:[#allocation9 + $0x40] sm:$0xff]
    %v1312 = vld [vmem:[#allocation9 + $0x48] sm:$0xff]
    %v1313 = vld [vmem:[#allocation9 + $0x50] sm:$0xff]
    %v1314 = vld [vmem:[#allocation9 + $0x58] sm:$0xff]
    %v1315 = vld [vmem:[#allocation9 + $0x60] sm:$0xff]
    %v1316 = vld [vmem:[#allocation9 + $0x68] sm:$0xff]
    %v1317 = vld [vmem:[#allocation9 + $0x70] sm:$0xff]
    %v1318 = vld [vmem:[#allocation9 + $0x78] sm:$0xff]
    %1319 = vmatprep.subr.mxu0 0.0
    %1320 = vmatpush1.msra.mxu0 0.0
    %1321 = vmatprep.subr.mxu0 0.0
    %1322 = vmatpush1.msra.mxu0 0.0
    %1323 = vmatprep.subr.mxu0 0.0
    %1324 = vmatpush1.msra.mxu0 0.0
    %1325 = vmatprep.subr.mxu0 0.0
    %1326 = vmatpush1.msra.mxu0 0.0
    %1327 = vmatprep.subr.mxu0 0.0
    %1328 = vmatpush1.msra.mxu0 0.0
    %1329 = vmatprep.subr.mxu0 0.0
    %1330 = vmatpush1.msra.mxu0 0.0
    %1331 = vmatprep.subr.mxu0 0.0
    %1332 = vmatpush1.msra.mxu0 0.0
    %1333 = vmatprep.subr.mxu0 0.0
    %1334 = vmatpush1.msra.mxu0 0.0
    %1335 = vmatprep.subr.mxu0 %v1318
    %1336 = vmatpush1.msra.mxu0 %v1317
    %1337 = vmatprep.subr.mxu0 %v1316
    %1338 = vmatpush1.msra.mxu0 %v1315
    %1339 = vmatprep.subr.mxu0 %v1314
    %1340 = vmatpush1.msra.mxu0 %v1313
    %1341 = vmatprep.subr.mxu0 %v1312
    %1342 = vmatpush1.msra.mxu0 %v1311
    %1343 = vmatprep.subr.mxu0 %v1310
    %1344 = vmatpush1.msra.mxu0 %v1309
    %1345 = vmatprep.subr.mxu0 %v1308
    %1346 = vmatpush1.msra.mxu0 %v1307
    %1347 = vmatprep.subr.mxu0 %v1306
    %1348 = vmatpush1.msra.mxu0 %v1305
    %1349 = vmatprep.subr.mxu0 %v1304
    %1350 = vmatpush1.msra.mxu0 %v1303
    %1351 = vmatprep.subr.mxu0 0.0
    %1352 = vmatpush2.msra.mxu0 0.0
    %1353 = vmatprep.subr.mxu0 0.0
    %1354 = vmatpush2.msra.mxu0 0.0
    %1355 = vmatprep.subr.mxu0 0.0
    %1356 = vmatpush2.msra.mxu0 0.0
    %1357 = vmatprep.subr.mxu0 0.0
    %1358 = vmatpush2.msra.mxu0 0.0
    %1359 = vmatprep.subr.mxu0 0.0
    %1360 = vmatpush2.msra.mxu0 0.0
    %1361 = vmatprep.subr.mxu0 0.0
    %1362 = vmatpush2.msra.mxu0 0.0
    %1363 = vmatprep.subr.mxu0 0.0
    %1364 = vmatpush2.msra.mxu0 0.0
    %1365 = vmatprep.subr.mxu0 0.0
    %1366 = vmatpush2.msra.mxu0 0.0
    %1367 = vmatprep.subr.mxu0 0.0
    %1368 = vmatpush2.msra.mxu0 0.0
    %1369 = vmatprep.subr.mxu0 0.0
    %1370 = vmatpush2.msra.mxu0 0.0
    %1371 = vmatprep.subr.mxu0 0.0
    %1372 = vmatpush2.msra.mxu0 0.0
    %1373 = vmatprep.subr.mxu0 0.0
    %1374 = vmatpush2.msra.mxu0 0.0
    %1375 = vmatprep.subr.mxu0 0.0
    %1376 = vmatpush2.msra.mxu0 0.0
    %1377 = vmatprep.subr.mxu0 0.0
    %1378 = vmatpush2.msra.mxu0 0.0
    %1379 = vmatprep.subr.mxu0 0.0
    %1380 = vmatpush2.msra.mxu0 0.0
    %1381 = vmatprep.subr.mxu0 0.0
    %1382 = vmatpush2.msra.mxu0 0.0
    %1383 = vmatprep.mubr.f32.mxu0 0.0
    %1384 = vmatmul.mubr.f32.gmra.mxu0 %v275
    %v1385 = vpop.f32.mrf.mxu0
    %v1386 = vadd.f32 0.0, %v1385
    %v1387 = vpop.f32.mrf.mxu0
    %v1388 = vadd.f32 0.0, %v1387
    %1389 = vdwg.mxu0
    %v1390 = vadd.f32 %v1257, %v1386
    %v1391 = vadd.f32 %v1259, %v1388
    %v1392 = vxor.u32 %v1390, 2147483648
    %v1393 = vxor.u32 %v1391, 2147483648
    %v1394 = vmul.f32 %v1392, 1.442695
    %v1395 = vpow.pop %v1394
    %v1396 = vmul.f32 %v1393, 1.442695
    %v1397 = vpow.pop %v1396
    %v1398 = vadd.f32 %v1395, 1.0
    %v1399 = vadd.f32 %v1397, 1.0
    %v1400 = vrcp.pop %v1398
    %v1401 = vmul.f32 1.0, %v1400
    %v1402 = vrcp.pop %v1399
    %v1403 = vmul.f32 1.0, %v1402
    %v1404 = vtanh.pop %v1391
    %v1405 = vmul.f32 %v1401, 0.0
    %1407 = vrot.lane.b32.xlu0 %v1404, 64
    %v1408 = vpop.permute.xlu0 %1407
    %v1410 = vmul.f32 %v1401, %v1408
    %1412 = vrot.lane.b32.xlu0 %v1410, 64
    %v1413 = vpop.permute.xlu0 %1412
    %v1415 = vadd.f32 %v1405, %v1413
    %v1416 = vtanh.pop %v1415
    %1418 = vrot.lane.b32.xlu0 %v1416, 64
    %v1419 = vpop.permute.xlu0 %1418
    %v1421 = vmul.f32 %v1403, %v1419
    %v1423 = vsel %vm273, %v1421, 0
    %1425 = vmatprep.subr.mxu0 0.0
    %1426 = vmatpush1.msra.mxu0 0.0
    %1427 = vmatprep.subr.mxu0 0.0
    %1428 = vmatpush1.msra.mxu0 0.0
    %1429 = vmatprep.subr.mxu0 0.0
    %1430 = vmatpush1.msra.mxu0 0.0
    %1431 = vmatprep.subr.mxu0 0.0
    %1432 = vmatpush1.msra.mxu0 0.0
    %1433 = vmatprep.subr.mxu0 0.0
    %1434 = vmatpush1.msra.mxu0 0.0
    %1435 = vmatprep.subr.mxu0 0.0
    %1436 = vmatpush1.msra.mxu0 0.0
    %1437 = vmatprep.subr.mxu0 0.0
    %1438 = vmatpush1.msra.mxu0 0.0
    %1439 = vmatprep.subr.mxu0 0.0
    %1440 = vmatpush1.msra.mxu0 0.0
    %1441 = vmatprep.subr.mxu0 %v1318
    %1442 = vmatpush1.msra.mxu0 %v1317
    %1443 = vmatprep.subr.mxu0 %v1316
    %1444 = vmatpush1.msra.mxu0 %v1315
    %1445 = vmatprep.subr.mxu0 %v1314
    %1446 = vmatpush1.msra.mxu0 %v1313
    %1447 = vmatprep.subr.mxu0 %v1312
    %1448 = vmatpush1.msra.mxu0 %v1311
    %1449 = vmatprep.subr.mxu0 %v1310
    %1450 = vmatpush1.msra.mxu0 %v1309
    %1451 = vmatprep.subr.mxu0 %v1308
    %1452 = vmatpush1.msra.mxu0 %v1307
    %1453 = vmatprep.subr.mxu0 %v1306
    %1454 = vmatpush1.msra.mxu0 %v1305
    %1455 = vmatprep.subr.mxu0 %v1304
    %1456 = vmatpush1.msra.mxu0 %v1303
    %1457 = vmatprep.subr.mxu0 0.0
    %1458 = vmatpush2.msra.mxu0 0.0
    %1459 = vmatprep.subr.mxu0 0.0
    %1460 = vmatpush2.msra.mxu0 0.0
    %1461 = vmatprep.subr.mxu0 0.0
    %1462 = vmatpush2.msra.mxu0 0.0
    %1463 = vmatprep.subr.mxu0 0.0
    %1464 = vmatpush2.msra.mxu0 0.0
    %1465 = vmatprep.subr.mxu0 0.0
    %1466 = vmatpush2.msra.mxu0 0.0
    %1467 = vmatprep.subr.mxu0 0.0
    %1468 = vmatpush2.msra.mxu0 0.0
    %1469 = vmatprep.subr.mxu0 0.0
    %1470 = vmatpush2.msra.mxu0 0.0
    %1471 = vmatprep.subr.mxu0 0.0
    %1472 = vmatpush2.msra.mxu0 0.0
    %1473 = vmatprep.subr.mxu0 0.0
    %1474 = vmatpush2.msra.mxu0 0.0
    %1475 = vmatprep.subr.mxu0 0.0
    %1476 = vmatpush2.msra.mxu0 0.0
    %1477 = vmatprep.subr.mxu0 0.0
    %1478 = vmatpush2.msra.mxu0 0.0
    %1479 = vmatprep.subr.mxu0 0.0
    %1480 = vmatpush2.msra.mxu0 0.0
    %1481 = vmatprep.subr.mxu0 0.0
    %1482 = vmatpush2.msra.mxu0 0.0
    %1483 = vmatprep.subr.mxu0 0.0
    %1484 = vmatpush2.msra.mxu0 0.0
    %1485 = vmatprep.subr.mxu0 0.0
    %1486 = vmatpush2.msra.mxu0 0.0
    %1487 = vmatprep.subr.mxu0 0.0
    %1488 = vmatpush2.msra.mxu0 0.0
    %1489 = vmatprep.mubr.f32.mxu0 0.0
    %1490 = vmatmul.mubr.f32.gmra.mxu0 %v1423
    %v1491 = vpop.f32.mrf.mxu0
    %v1492 = vadd.f32 0.0, %v1491
    %v1493 = vpop.f32.mrf.mxu0
    %v1494 = vadd.f32 0.0, %v1493
    %1495 = vdwg.mxu0
    %v1496 = vadd.f32 %v1263, %v1492
    %v1497 = vadd.f32 %v1265, %v1494
    %v1498 = vxor.u32 %v1496, 2147483648
    %v1499 = vxor.u32 %v1497, 2147483648
    %v1500 = vmul.f32 %v1498, 1.442695
    %v1501 = vpow.pop %v1500
    %v1502 = vmul.f32 %v1499, 1.442695
    %v1503 = vpow.pop %v1502
    %v1504 = vadd.f32 %v1501, 1.0
    %v1505 = vadd.f32 %v1503, 1.0
    %v1506 = vrcp.pop %v1504
    %v1507 = vmul.f32 1.0, %v1506
    %v1508 = vrcp.pop %v1505
    %v1509 = vmul.f32 1.0, %v1508
    %v1510 = vtanh.pop %v1497
    %v1511 = vmul.f32 %v1507, %v1415
    %1513 = vrot.lane.b32.xlu0 %v1510, 64
    %v1514 = vpop.permute.xlu0 %1513
    %v1516 = vmul.f32 %v1507, %v1514
    %1518 = vrot.lane.b32.xlu0 %v1516, 64
    %v1519 = vpop.permute.xlu0 %1518
    %v1521 = vadd.f32 %v1511, %v1519
    %v1522 = vtanh.pop %v1521
    %1524 = vrot.lane.b32.xlu0 %v1522, 64
    %v1525 = vpop.permute.xlu0 %1524
    %v1527 = vmul.f32 %v1509, %v1525
    %v1529 = vsel %vm273, %v1527, 0
    %1531 = vmatprep.subr.mxu0 0.0
    %1532 = vmatpush1.msra.mxu0 0.0
    %1533 = vmatprep.subr.mxu0 0.0
    %1534 = vmatpush1.msra.mxu0 0.0
    %1535 = vmatprep.subr.mxu0 0.0
    %1536 = vmatpush1.msra.mxu0 0.0
    %1537 = vmatprep.subr.mxu0 0.0
    %1538 = vmatpush1.msra.mxu0 0.0
    %1539 = vmatprep.subr.mxu0 0.0
    %1540 = vmatpush1.msra.mxu0 0.0
    %1541 = vmatprep.subr.mxu0 0.0
    %1542 = vmatpush1.msra.mxu0 0.0
    %1543 = vmatprep.subr.mxu0 0.0
    %1544 = vmatpush1.msra.mxu0 0.0
    %1545 = vmatprep.subr.mxu0 0.0
    %1546 = vmatpush1.msra.mxu0 0.0
    %1547 = vmatprep.subr.mxu0 %v1318
    %1548 = vmatpush1.msra.mxu0 %v1317
    %1549 = vmatprep.subr.mxu0 %v1316
    %1550 = vmatpush1.msra.mxu0 %v1315
    %1551 = vmatprep.subr.mxu0 %v1314
    %1552 = vmatpush1.msra.mxu0 %v1313
    %1553 = vmatprep.subr.mxu0 %v1312
    %1554 = vmatpush1.msra.mxu0 %v1311
    %1555 = vmatprep.subr.mxu0 %v1310
    %1556 = vmatpush1.msra.mxu0 %v1309
    %1557 = vmatprep.subr.mxu0 %v1308
    %1558 = vmatpush1.msra.mxu0 %v1307
    %1559 = vmatprep.subr.mxu0 %v1306
    %1560 = vmatpush1.msra.mxu0 %v1305
    %1561 = vmatprep.subr.mxu0 %v1304
    %1562 = vmatpush1.msra.mxu0 %v1303
    %1563 = vmatprep.subr.mxu0 0.0
    %1564 = vmatpush2.msra.mxu0 0.0
    %1565 = vmatprep.subr.mxu0 0.0
    %1566 = vmatpush2.msra.mxu0 0.0
    %1567 = vmatprep.subr.mxu0 0.0
    %1568 = vmatpush2.msra.mxu0 0.0
    %1569 = vmatprep.subr.mxu0 0.0
    %1570 = vmatpush2.msra.mxu0 0.0
    %1571 = vmatprep.subr.mxu0 0.0
    %1572 = vmatpush2.msra.mxu0 0.0
    %1573 = vmatprep.subr.mxu0 0.0
    %1574 = vmatpush2.msra.mxu0 0.0
    %1575 = vmatprep.subr.mxu0 0.0
    %1576 = vmatpush2.msra.mxu0 0.0
    %1577 = vmatprep.subr.mxu0 0.0
    %1578 = vmatpush2.msra.mxu0 0.0
    %1579 = vmatprep.subr.mxu0 0.0
    %1580 = vmatpush2.msra.mxu0 0.0
    %1581 = vmatprep.subr.mxu0 0.0
    %1582 = vmatpush2.msra.mxu0 0.0
    %1583 = vmatprep.subr.mxu0 0.0
    %1584 = vmatpush2.msra.mxu0 0.0
    %1585 = vmatprep.subr.mxu0 0.0
    %1586 = vmatpush2.msra.mxu0 0.0
    %1587 = vmatprep.subr.mxu0 0.0
    %1588 = vmatpush2.msra.mxu0 0.0
    %1589 = vmatprep.subr.mxu0 0.0
    %1590 = vmatpush2.msra.mxu0 0.0
    %1591 = vmatprep.subr.mxu0 0.0
    %1592 = vmatpush2.msra.mxu0 0.0
    %1593 = vmatprep.subr.mxu0 0.0
    %1594 = vmatpush2.msra.mxu0 0.0
    %1595 = vmatprep.mubr.f32.mxu0 0.0
    %1596 = vmatmul.mubr.f32.gmra.mxu0 %v1529
    %v1597 = vpop.f32.mrf.mxu0
    %v1598 = vadd.f32 0.0, %v1597
    %v1599 = vpop.f32.mrf.mxu0
    %v1600 = vadd.f32 0.0, %v1599
    %1601 = vdwg.mxu0
    %v1602 = vadd.f32 %v1269, %v1598
    %v1603 = vadd.f32 %v1271, %v1600
    %v1604 = vxor.u32 %v1602, 2147483648
    %v1605 = vxor.u32 %v1603, 2147483648
    %v1606 = vmul.f32 %v1604, 1.442695
    %v1607 = vpow.pop %v1606
    %v1608 = vmul.f32 %v1605, 1.442695
    %v1609 = vpow.pop %v1608
    %v1610 = vadd.f32 %v1607, 1.0
    %v1611 = vadd.f32 %v1609, 1.0
    %v1612 = vrcp.pop %v1610
    %v1613 = vmul.f32 1.0, %v1612
    %v1614 = vrcp.pop %v1611
    %v1615 = vmul.f32 1.0, %v1614
    %v1616 = vtanh.pop %v1603
    %v1617 = vmul.f32 %v1613, %v1521
    %1619 = vrot.lane.b32.xlu0 %v1616, 64
    %v1620 = vpop.permute.xlu0 %1619
    %v1622 = vmul.f32 %v1613, %v1620
    %1624 = vrot.lane.b32.xlu0 %v1622, 64
    %v1625 = vpop.permute.xlu0 %1624
    %v1627 = vadd.f32 %v1617, %v1625
    %v1628 = vtanh.pop %v1627
    %1630 = vrot.lane.b32.xlu0 %v1628, 64
    %v1631 = vpop.permute.xlu0 %1630
    %v1633 = vmul.f32 %v1615, %v1631
    %v1635 = vsel %vm273, %v1633, 0
    %1637 = vmatprep.subr.mxu0 0.0
    %1638 = vmatpush1.msra.mxu0 0.0
    %1639 = vmatprep.subr.mxu0 0.0
    %1640 = vmatpush1.msra.mxu0 0.0
    %1641 = vmatprep.subr.mxu0 0.0
    %1642 = vmatpush1.msra.mxu0 0.0
    %1643 = vmatprep.subr.mxu0 0.0
    %1644 = vmatpush1.msra.mxu0 0.0
    %1645 = vmatprep.subr.mxu0 0.0
    %1646 = vmatpush1.msra.mxu0 0.0
    %1647 = vmatprep.subr.mxu0 0.0
    %1648 = vmatpush1.msra.mxu0 0.0
    %1649 = vmatprep.subr.mxu0 0.0
    %1650 = vmatpush1.msra.mxu0 0.0
    %1651 = vmatprep.subr.mxu0 0.0
    %1652 = vmatpush1.msra.mxu0 0.0
    %1653 = vmatprep.subr.mxu0 %v1318
    %1654 = vmatpush1.msra.mxu0 %v1317
    %1655 = vmatprep.subr.mxu0 %v1316
    %1656 = vmatpush1.msra.mxu0 %v1315
    %1657 = vmatprep.subr.mxu0 %v1314
    %1658 = vmatpush1.msra.mxu0 %v1313
    %1659 = vmatprep.subr.mxu0 %v1312
    %1660 = vmatpush1.msra.mxu0 %v1311
    %1661 = vmatprep.subr.mxu0 %v1310
    %1662 = vmatpush1.msra.mxu0 %v1309
    %1663 = vmatprep.subr.mxu0 %v1308
    %1664 = vmatpush1.msra.mxu0 %v1307
    %1665 = vmatprep.subr.mxu0 %v1306
    %1666 = vmatpush1.msra.mxu0 %v1305
    %1667 = vmatprep.subr.mxu0 %v1304
    %1668 = vmatpush1.msra.mxu0 %v1303
    %1669 = vmatprep.subr.mxu0 0.0
    %1670 = vmatpush2.msra.mxu0 0.0
    %1671 = vmatprep.subr.mxu0 0.0
    %1672 = vmatpush2.msra.mxu0 0.0
    %1673 = vmatprep.subr.mxu0 0.0
    %1674 = vmatpush2.msra.mxu0 0.0
    %1675 = vmatprep.subr.mxu0 0.0
    %1676 = vmatpush2.msra.mxu0 0.0
    %1677 = vmatprep.subr.mxu0 0.0
    %1678 = vmatpush2.msra.mxu0 0.0
    %1679 = vmatprep.subr.mxu0 0.0
    %1680 = vmatpush2.msra.mxu0 0.0
    %1681 = vmatprep.subr.mxu0 0.0
    %1682 = vmatpush2.msra.mxu0 0.0
    %1683 = vmatprep.subr.mxu0 0.0
    %1684 = vmatpush2.msra.mxu0 0.0
    %1685 = vmatprep.subr.mxu0 0.0
    %1686 = vmatpush2.msra.mxu0 0.0
    %1687 = vmatprep.subr.mxu0 0.0
    %1688 = vmatpush2.msra.mxu0 0.0
    %1689 = vmatprep.subr.mxu0 0.0
    %1690 = vmatpush2.msra.mxu0 0.0
    %1691 = vmatprep.subr.mxu0 0.0
    %1692 = vmatpush2.msra.mxu0 0.0
    %1693 = vmatprep.subr.mxu0 0.0
    %1694 = vmatpush2.msra.mxu0 0.0
    %1695 = vmatprep.subr.mxu0 0.0
    %1696 = vmatpush2.msra.mxu0 0.0
    %1697 = vmatprep.subr.mxu0 0.0
    %1698 = vmatpush2.msra.mxu0 0.0
    %1699 = vmatprep.subr.mxu0 0.0
    %1700 = vmatpush2.msra.mxu0 0.0
    %1701 = vmatprep.mubr.f32.mxu0 0.0
    %1702 = vmatmul.mubr.f32.gmra.mxu0 %v1635
    %v1703 = vpop.f32.mrf.mxu0
    %v1704 = vadd.f32 0.0, %v1703
    %v1705 = vpop.f32.mrf.mxu0
    %v1706 = vadd.f32 0.0, %v1705
    %1707 = vdwg.mxu0
    %v1708 = vadd.f32 %v1275, %v1704
    %v1709 = vadd.f32 %v1277, %v1706
    %v1710 = vxor.u32 %v1708, 2147483648
    %v1711 = vxor.u32 %v1709, 2147483648
    %v1712 = vmul.f32 %v1710, 1.442695
    %v1713 = vpow.pop %v1712
    %v1714 = vmul.f32 %v1711, 1.442695
    %v1715 = vpow.pop %v1714
    %v1716 = vadd.f32 %v1713, 1.0
    %v1717 = vadd.f32 %v1715, 1.0
    %v1718 = vrcp.pop %v1716
    %v1719 = vmul.f32 1.0, %v1718
    %v1720 = vrcp.pop %v1717
    %v1721 = vmul.f32 1.0, %v1720
    %v1722 = vtanh.pop %v1709
    %v1723 = vmul.f32 %v1719, %v1627
    %1725 = vrot.lane.b32.xlu0 %v1722, 64
    %v1726 = vpop.permute.xlu0 %1725
    %v1728 = vmul.f32 %v1719, %v1726
    %1730 = vrot.lane.b32.xlu0 %v1728, 64
    %v1731 = vpop.permute.xlu0 %1730
    %v1733 = vadd.f32 %v1723, %v1731
    %v1734 = vtanh.pop %v1733
    %1736 = vrot.lane.b32.xlu0 %v1734, 64
    %v1737 = vpop.permute.xlu0 %1736
    %v1739 = vmul.f32 %v1721, %v1737
    %v1741 = vsel %vm273, %v1739, 0
    %1743 = vmatprep.subr.mxu0 0.0
    %1744 = vmatpush1.msra.mxu0 0.0
    %1745 = vmatprep.subr.mxu0 0.0
    %1746 = vmatpush1.msra.mxu0 0.0
    %1747 = vmatprep.subr.mxu0 0.0
    %1748 = vmatpush1.msra.mxu0 0.0
    %1749 = vmatprep.subr.mxu0 0.0
    %1750 = vmatpush1.msra.mxu0 0.0
    %1751 = vmatprep.subr.mxu0 0.0
    %1752 = vmatpush1.msra.mxu0 0.0
    %1753 = vmatprep.subr.mxu0 0.0
    %1754 = vmatpush1.msra.mxu0 0.0
    %1755 = vmatprep.subr.mxu0 0.0
    %1756 = vmatpush1.msra.mxu0 0.0
    %1757 = vmatprep.subr.mxu0 0.0
    %1758 = vmatpush1.msra.mxu0 0.0
    %1759 = vmatprep.subr.mxu0 %v1318
    %1760 = vmatpush1.msra.mxu0 %v1317
    %1761 = vmatprep.subr.mxu0 %v1316
    %1762 = vmatpush1.msra.mxu0 %v1315
    %1763 = vmatprep.subr.mxu0 %v1314
    %1764 = vmatpush1.msra.mxu0 %v1313
    %1765 = vmatprep.subr.mxu0 %v1312
    %1766 = vmatpush1.msra.mxu0 %v1311
    %1767 = vmatprep.subr.mxu0 %v1310
    %1768 = vmatpush1.msra.mxu0 %v1309
    %1769 = vmatprep.subr.mxu0 %v1308
    %1770 = vmatpush1.msra.mxu0 %v1307
    %1771 = vmatprep.subr.mxu0 %v1306
    %1772 = vmatpush1.msra.mxu0 %v1305
    %1773 = vmatprep.subr.mxu0 %v1304
    %1774 = vmatpush1.msra.mxu0 %v1303
    %1775 = vmatprep.subr.mxu0 0.0
    %1776 = vmatpush2.msra.mxu0 0.0
    %1777 = vmatprep.subr.mxu0 0.0
    %1778 = vmatpush2.msra.mxu0 0.0
    %1779 = vmatprep.subr.mxu0 0.0
    %1780 = vmatpush2.msra.mxu0 0.0
    %1781 = vmatprep.subr.mxu0 0.0
    %1782 = vmatpush2.msra.mxu0 0.0
    %1783 = vmatprep.subr.mxu0 0.0
    %1784 = vmatpush2.msra.mxu0 0.0
    %1785 = vmatprep.subr.mxu0 0.0
    %1786 = vmatpush2.msra.mxu0 0.0
    %1787 = vmatprep.subr.mxu0 0.0
    %1788 = vmatpush2.msra.mxu0 0.0
    %1789 = vmatprep.subr.mxu0 0.0
    %1790 = vmatpush2.msra.mxu0 0.0
    %1791 = vmatprep.subr.mxu0 0.0
    %1792 = vmatpush2.msra.mxu0 0.0
    %1793 = vmatprep.subr.mxu0 0.0
    %1794 = vmatpush2.msra.mxu0 0.0
    %1795 = vmatprep.subr.mxu0 0.0
    %1796 = vmatpush2.msra.mxu0 0.0
    %1797 = vmatprep.subr.mxu0 0.0
    %1798 = vmatpush2.msra.mxu0 0.0
    %1799 = vmatprep.subr.mxu0 0.0
    %1800 = vmatpush2.msra.mxu0 0.0
    %1801 = vmatprep.subr.mxu0 0.0
    %1802 = vmatpush2.msra.mxu0 0.0
    %1803 = vmatprep.subr.mxu0 0.0
    %1804 = vmatpush2.msra.mxu0 0.0
    %1805 = vmatprep.subr.mxu0 0.0
    %1806 = vmatpush2.msra.mxu0 0.0
    %1807 = vmatprep.mubr.f32.mxu0 0.0
    %1808 = vmatmul.mubr.f32.gmra.mxu0 %v1741
    %v1809 = vpop.f32.mrf.mxu0
    %v1810 = vadd.f32 0.0, %v1809
    %v1811 = vpop.f32.mrf.mxu0
    %v1812 = vadd.f32 0.0, %v1811
    %1813 = vdwg.mxu0
    %v1814 = vadd.f32 %v1281, %v1810
    %v1815 = vadd.f32 %v1283, %v1812
    %v1816 = vxor.u32 %v1814, 2147483648
    %v1817 = vxor.u32 %v1815, 2147483648
    %v1818 = vmul.f32 %v1816, 1.442695
    %v1819 = vpow.pop %v1818
    %v1820 = vmul.f32 %v1817, 1.442695
    %v1821 = vpow.pop %v1820
    %v1822 = vadd.f32 %v1819, 1.0
    %v1823 = vadd.f32 %v1821, 1.0
    %v1824 = vrcp.pop %v1822
    %v1825 = vmul.f32 1.0, %v1824
    %v1826 = vrcp.pop %v1823
    %v1827 = vmul.f32 1.0, %v1826
    %v1828 = vtanh.pop %v1815
    %v1829 = vmul.f32 %v1825, %v1733
    %1831 = vrot.lane.b32.xlu0 %v1828, 64
    %v1832 = vpop.permute.xlu0 %1831
    %v1834 = vmul.f32 %v1825, %v1832
    %1836 = vrot.lane.b32.xlu0 %v1834, 64
    %v1837 = vpop.permute.xlu0 %1836
    %v1839 = vadd.f32 %v1829, %v1837
    %v1840 = vtanh.pop %v1839
    %1842 = vrot.lane.b32.xlu0 %v1840, 64
    %v1843 = vpop.permute.xlu0 %1842
    %v1845 = vmul.f32 %v1827, %v1843
    %v1847 = vsel %vm273, %v1845, 0
    %1849 = vmatprep.subr.mxu0 0.0
    %1850 = vmatpush1.msra.mxu0 0.0
    %1851 = vmatprep.subr.mxu0 0.0
    %1852 = vmatpush1.msra.mxu0 0.0
    %1853 = vmatprep.subr.mxu0 0.0
    %1854 = vmatpush1.msra.mxu0 0.0
    %1855 = vmatprep.subr.mxu0 0.0
    %1856 = vmatpush1.msra.mxu0 0.0
    %1857 = vmatprep.subr.mxu0 0.0
    %1858 = vmatpush1.msra.mxu0 0.0
    %1859 = vmatprep.subr.mxu0 0.0
    %1860 = vmatpush1.msra.mxu0 0.0
    %1861 = vmatprep.subr.mxu0 0.0
    %1862 = vmatpush1.msra.mxu0 0.0
    %1863 = vmatprep.subr.mxu0 0.0
    %1864 = vmatpush1.msra.mxu0 0.0
    %1865 = vmatprep.subr.mxu0 %v1318
    %1866 = vmatpush1.msra.mxu0 %v1317
    %1867 = vmatprep.subr.mxu0 %v1316
    %1868 = vmatpush1.msra.mxu0 %v1315
    %1869 = vmatprep.subr.mxu0 %v1314
    %1870 = vmatpush1.msra.mxu0 %v1313
    %1871 = vmatprep.subr.mxu0 %v1312
    %1872 = vmatpush1.msra.mxu0 %v1311
    %1873 = vmatprep.subr.mxu0 %v1310
    %1874 = vmatpush1.msra.mxu0 %v1309
    %1875 = vmatprep.subr.mxu0 %v1308
    %1876 = vmatpush1.msra.mxu0 %v1307
    %1877 = vmatprep.subr.mxu0 %v1306
    %1878 = vmatpush1.msra.mxu0 %v1305
    %1879 = vmatprep.subr.mxu0 %v1304
    %1880 = vmatpush1.msra.mxu0 %v1303
    %1881 = vmatprep.subr.mxu0 0.0
    %1882 = vmatpush2.msra.mxu0 0.0
    %1883 = vmatprep.subr.mxu0 0.0
    %1884 = vmatpush2.msra.mxu0 0.0
    %1885 = vmatprep.subr.mxu0 0.0
    %1886 = vmatpush2.msra.mxu0 0.0
    %1887 = vmatprep.subr.mxu0 0.0
    %1888 = vmatpush2.msra.mxu0 0.0
    %1889 = vmatprep.subr.mxu0 0.0
    %1890 = vmatpush2.msra.mxu0 0.0
    %1891 = vmatprep.subr.mxu0 0.0
    %1892 = vmatpush2.msra.mxu0 0.0
    %1893 = vmatprep.subr.mxu0 0.0
    %1894 = vmatpush2.msra.mxu0 0.0
    %1895 = vmatprep.subr.mxu0 0.0
    %1896 = vmatpush2.msra.mxu0 0.0
    %1897 = vmatprep.subr.mxu0 0.0
    %1898 = vmatpush2.msra.mxu0 0.0
    %1899 = vmatprep.subr.mxu0 0.0
    %1900 = vmatpush2.msra.mxu0 0.0
    %1901 = vmatprep.subr.mxu0 0.0
    %1902 = vmatpush2.msra.mxu0 0.0
    %1903 = vmatprep.subr.mxu0 0.0
    %1904 = vmatpush2.msra.mxu0 0.0
    %1905 = vmatprep.subr.mxu0 0.0
    %1906 = vmatpush2.msra.mxu0 0.0
    %1907 = vmatprep.subr.mxu0 0.0
    %1908 = vmatpush2.msra.mxu0 0.0
    %1909 = vmatprep.subr.mxu0 0.0
    %1910 = vmatpush2.msra.mxu0 0.0
    %1911 = vmatprep.subr.mxu0 0.0
    %1912 = vmatpush2.msra.mxu0 0.0
    %1913 = vmatprep.mubr.f32.mxu0 0.0
    %1914 = vmatmul.mubr.f32.gmra.mxu0 %v1847
    %v1915 = vpop.f32.mrf.mxu0
    %v1916 = vadd.f32 0.0, %v1915
    %v1917 = vpop.f32.mrf.mxu0
    %v1918 = vadd.f32 0.0, %v1917
    %1919 = vdwg.mxu0
    %v1920 = vadd.f32 %v1287, %v1916
    %v1921 = vadd.f32 %v1289, %v1918
    %v1922 = vxor.u32 %v1920, 2147483648
    %v1923 = vxor.u32 %v1921, 2147483648
    %v1924 = vmul.f32 %v1922, 1.442695
    %v1925 = vpow.pop %v1924
    %v1926 = vmul.f32 %v1923, 1.442695
    %v1927 = vpow.pop %v1926
    %v1928 = vadd.f32 %v1925, 1.0
    %v1929 = vadd.f32 %v1927, 1.0
    %v1930 = vrcp.pop %v1928
    %v1931 = vmul.f32 1.0, %v1930
    %v1932 = vrcp.pop %v1929
    %v1933 = vmul.f32 1.0, %v1932
    %v1934 = vtanh.pop %v1921
    %v1935 = vmul.f32 %v1931, %v1839
    %1937 = vrot.lane.b32.xlu0 %v1934, 64
    %v1938 = vpop.permute.xlu0 %1937
    %v1940 = vmul.f32 %v1931, %v1938
    %1942 = vrot.lane.b32.xlu0 %v1940, 64
    %v1943 = vpop.permute.xlu0 %1942
    %v1945 = vadd.f32 %v1935, %v1943
    %v1946 = vtanh.pop %v1945
    %1948 = vrot.lane.b32.xlu0 %v1946, 64
    %v1949 = vpop.permute.xlu0 %1948
    %v1951 = vmul.f32 %v1933, %v1949
    %v1953 = vsel %vm273, %v1951, 0
    %1955 = vmatprep.subr.mxu0 0.0
    %1956 = vmatpush1.msra.mxu0 0.0
    %1957 = vmatprep.subr.mxu0 0.0
    %1958 = vmatpush1.msra.mxu0 0.0
    %1959 = vmatprep.subr.mxu0 0.0
    %1960 = vmatpush1.msra.mxu0 0.0
    %1961 = vmatprep.subr.mxu0 0.0
    %1962 = vmatpush1.msra.mxu0 0.0
    %1963 = vmatprep.subr.mxu0 0.0
    %1964 = vmatpush1.msra.mxu0 0.0
    %1965 = vmatprep.subr.mxu0 0.0
    %1966 = vmatpush1.msra.mxu0 0.0
    %1967 = vmatprep.subr.mxu0 0.0
    %1968 = vmatpush1.msra.mxu0 0.0
    %1969 = vmatprep.subr.mxu0 0.0
    %1970 = vmatpush1.msra.mxu0 0.0
    %1971 = vmatprep.subr.mxu0 %v1318
    %1972 = vmatpush1.msra.mxu0 %v1317
    %1973 = vmatprep.subr.mxu0 %v1316
    %1974 = vmatpush1.msra.mxu0 %v1315
    %1975 = vmatprep.subr.mxu0 %v1314
    %1976 = vmatpush1.msra.mxu0 %v1313
    %1977 = vmatprep.subr.mxu0 %v1312
    %1978 = vmatpush1.msra.mxu0 %v1311
    %1979 = vmatprep.subr.mxu0 %v1310
    %1980 = vmatpush1.msra.mxu0 %v1309
    %1981 = vmatprep.subr.mxu0 %v1308
    %1982 = vmatpush1.msra.mxu0 %v1307
    %1983 = vmatprep.subr.mxu0 %v1306
    %1984 = vmatpush1.msra.mxu0 %v1305
    %1985 = vmatprep.subr.mxu0 %v1304
    %1986 = vmatpush1.msra.mxu0 %v1303
    %1987 = vmatprep.subr.mxu0 0.0
    %1988 = vmatpush2.msra.mxu0 0.0
    %1989 = vmatprep.subr.mxu0 0.0
    %1990 = vmatpush2.msra.mxu0 0.0
    %1991 = vmatprep.subr.mxu0 0.0
    %1992 = vmatpush2.msra.mxu0 0.0
    %1993 = vmatprep.subr.mxu0 0.0
    %1994 = vmatpush2.msra.mxu0 0.0
    %1995 = vmatprep.subr.mxu0 0.0
    %1996 = vmatpush2.msra.mxu0 0.0
    %1997 = vmatprep.subr.mxu0 0.0
    %1998 = vmatpush2.msra.mxu0 0.0
    %1999 = vmatprep.subr.mxu0 0.0
    %2000 = vmatpush2.msra.mxu0 0.0
    %2001 = vmatprep.subr.mxu0 0.0
    %2002 = vmatpush2.msra.mxu0 0.0
    %2003 = vmatprep.subr.mxu0 0.0
    %2004 = vmatpush2.msra.mxu0 0.0
    %2005 = vmatprep.subr.mxu0 0.0
    %2006 = vmatpush2.msra.mxu0 0.0
    %2007 = vmatprep.subr.mxu0 0.0
    %2008 = vmatpush2.msra.mxu0 0.0
    %2009 = vmatprep.subr.mxu0 0.0
    %2010 = vmatpush2.msra.mxu0 0.0
    %2011 = vmatprep.subr.mxu0 0.0
    %2012 = vmatpush2.msra.mxu0 0.0
    %2013 = vmatprep.subr.mxu0 0.0
    %2014 = vmatpush2.msra.mxu0 0.0
    %2015 = vmatprep.subr.mxu0 0.0
    %2016 = vmatpush2.msra.mxu0 0.0
    %2017 = vmatprep.subr.mxu0 0.0
    %2018 = vmatpush2.msra.mxu0 0.0
    %2019 = vmatprep.mubr.f32.mxu0 0.0
    %2020 = vmatmul.mubr.f32.gmra.mxu0 %v1953
    %v2021 = vpop.f32.mrf.mxu0
    %v2022 = vadd.f32 0.0, %v2021
    %v2023 = vpop.f32.mrf.mxu0
    %v2024 = vadd.f32 0.0, %v2023
    %2025 = vdwg.mxu0
    %v2026 = vadd.f32 %v1293, %v2022
    %v2027 = vadd.f32 %v1295, %v2024
    %v2028 = vxor.u32 %v2026, 2147483648
    %v2029 = vxor.u32 %v2027, 2147483648
    %v2030 = vmul.f32 %v2028, 1.442695
    %v2031 = vpow.pop %v2030
    %v2032 = vmul.f32 %v2029, 1.442695
    %v2033 = vpow.pop %v2032
    %v2034 = vadd.f32 %v2031, 1.0
    %v2035 = vadd.f32 %v2033, 1.0
    %v2036 = vrcp.pop %v2034
    %v2037 = vmul.f32 1.0, %v2036
    %v2038 = vrcp.pop %v2035
    %v2039 = vmul.f32 1.0, %v2038
    %v2040 = vtanh.pop %v2027
    %v2041 = vmul.f32 %v2037, %v1945
    %2043 = vrot.lane.b32.xlu0 %v2040, 64
    %v2044 = vpop.permute.xlu0 %2043
    %v2046 = vmul.f32 %v2037, %v2044
    %2048 = vrot.lane.b32.xlu0 %v2046, 64
    %v2049 = vpop.permute.xlu0 %2048
    %v2051 = vadd.f32 %v2041, %v2049
    %v2052 = vtanh.pop %v2051
    %2054 = vrot.lane.b32.xlu0 %v2052, 64
    %v2055 = vpop.permute.xlu0 %2054
    %v2057 = vmul.f32 %v2039, %v2055
    %v2059 = vsel %vm273, %v2057, 0
    %2061 = vmatprep.subr.mxu0 0.0
    %2062 = vmatpush1.msra.mxu0 0.0
    %2063 = vmatprep.subr.mxu0 0.0
    %2064 = vmatpush1.msra.mxu0 0.0
    %2065 = vmatprep.subr.mxu0 0.0
    %2066 = vmatpush1.msra.mxu0 0.0
    %2067 = vmatprep.subr.mxu0 0.0
    %2068 = vmatpush1.msra.mxu0 0.0
    %2069 = vmatprep.subr.mxu0 0.0
    %2070 = vmatpush1.msra.mxu0 0.0
    %2071 = vmatprep.subr.mxu0 0.0
    %2072 = vmatpush1.msra.mxu0 0.0
    %2073 = vmatprep.subr.mxu0 0.0
    %2074 = vmatpush1.msra.mxu0 0.0
    %2075 = vmatprep.subr.mxu0 0.0
    %2076 = vmatpush1.msra.mxu0 0.0
    %2077 = vmatprep.subr.mxu0 %v1318
    %2078 = vmatpush1.msra.mxu0 %v1317
    %2079 = vmatprep.subr.mxu0 %v1316
    %2080 = vmatpush1.msra.mxu0 %v1315
    %2081 = vmatprep.subr.mxu0 %v1314
    %2082 = vmatpush1.msra.mxu0 %v1313
    %2083 = vmatprep.subr.mxu0 %v1312
    %2084 = vmatpush1.msra.mxu0 %v1311
    %2085 = vmatprep.subr.mxu0 %v1310
    %2086 = vmatpush1.msra.mxu0 %v1309
    %2087 = vmatprep.subr.mxu0 %v1308
    %2088 = vmatpush1.msra.mxu0 %v1307
    %2089 = vmatprep.subr.mxu0 %v1306
    %2090 = vmatpush1.msra.mxu0 %v1305
    %2091 = vmatprep.subr.mxu0 %v1304
    %2092 = vmatpush1.msra.mxu0 %v1303
    %2093 = vmatprep.subr.mxu0 0.0
    %2094 = vmatpush2.msra.mxu0 0.0
    %2095 = vmatprep.subr.mxu0 0.0
    %2096 = vmatpush2.msra.mxu0 0.0
    %2097 = vmatprep.subr.mxu0 0.0
    %2098 = vmatpush2.msra.mxu0 0.0
    %2099 = vmatprep.subr.mxu0 0.0
    %2100 = vmatpush2.msra.mxu0 0.0
    %2101 = vmatprep.subr.mxu0 0.0
    %2102 = vmatpush2.msra.mxu0 0.0
    %2103 = vmatprep.subr.mxu0 0.0
    %2104 = vmatpush2.msra.mxu0 0.0
    %2105 = vmatprep.subr.mxu0 0.0
    %2106 = vmatpush2.msra.mxu0 0.0
    %2107 = vmatprep.subr.mxu0 0.0
    %2108 = vmatpush2.msra.mxu0 0.0
    %2109 = vmatprep.subr.mxu0 0.0
    %2110 = vmatpush2.msra.mxu0 0.0
    %2111 = vmatprep.subr.mxu0 0.0
    %2112 = vmatpush2.msra.mxu0 0.0
    %2113 = vmatprep.subr.mxu0 0.0
    %2114 = vmatpush2.msra.mxu0 0.0
    %2115 = vmatprep.subr.mxu0 0.0
    %2116 = vmatpush2.msra.mxu0 0.0
    %2117 = vmatprep.subr.mxu0 0.0
    %2118 = vmatpush2.msra.mxu0 0.0
    %2119 = vmatprep.subr.mxu0 0.0
    %2120 = vmatpush2.msra.mxu0 0.0
    %2121 = vmatprep.subr.mxu0 0.0
    %2122 = vmatpush2.msra.mxu0 0.0
    %2123 = vmatprep.subr.mxu0 0.0
    %2124 = vmatpush2.msra.mxu0 0.0
    %2125 = vmatprep.mubr.f32.mxu0 0.0
    %2126 = vmatmul.mubr.f32.gmra.mxu0 %v2059
    %v2127 = vpop.f32.mrf.mxu0
    %v2128 = vadd.f32 0.0, %v2127
    %v2129 = vpop.f32.mrf.mxu0
    %v2130 = vadd.f32 0.0, %v2129
    %2131 = vdwg.mxu0
    %v2132 = vadd.f32 %v1299, %v2128
    %v2133 = vadd.f32 %v1301, %v2130
    %v2134 = vxor.u32 %v2132, 2147483648
    %v2135 = vxor.u32 %v2133, 2147483648
    %v2136 = vmul.f32 %v2134, 1.442695
    %v2137 = vpow.pop %v2136
    %v2138 = vmul.f32 %v2135, 1.442695
    %v2139 = vpow.pop %v2138
    %v2140 = vadd.f32 %v2137, 1.0
    %v2141 = vadd.f32 %v2139, 1.0
    %v2142 = vrcp.pop %v2140
    %v2143 = vmul.f32 1.0, %v2142
    %v2144 = vrcp.pop %v2141
    %v2145 = vmul.f32 1.0, %v2144
    %v2146 = vtanh.pop %v2133
    %v2147 = vmul.f32 %v2143, %v2051
    %2149 = vrot.lane.b32.xlu0 %v2146, 64
    %v2150 = vpop.permute.xlu0 %2149
    %v2152 = vmul.f32 %v2143, %v2150
    %2154 = vrot.lane.b32.xlu0 %v2152, 64
    %v2155 = vpop.permute.xlu0 %2154
    %v2157 = vadd.f32 %v2147, %v2155
    %v2158 = vtanh.pop %v2157
    %2160 = vrot.lane.b32.xlu0 %v2158, 64
    %v2161 = vpop.permute.xlu0 %2160
    %v2163 = vmul.f32 %v2145, %v2161
    %v2164 = vld [vmem:[%s7] sm:$0xff]
    %v2165 = vld [vmem:[%s7 + $0x8] sm:$0xff]
    %v2166 = vld [vmem:[%s7 + $0x10] sm:$0xff]
    %v2167 = vld [vmem:[%s7 + $0x18] sm:$0xff]
    %v2168 = vld [vmem:[%s7 + $0x20] sm:$0xff]
    %v2169 = vld [vmem:[%s7 + $0x28] sm:$0xff]
    %v2170 = vld [vmem:[%s7 + $0x30] sm:$0xff]
    %v2171 = vld [vmem:[%s7 + $0x38] sm:$0xff]
    %v2172 = vld [vmem:[%s8] sm:$0x1]
    %v2174 = vlaneseq
    %v2175 = vshrl.u32 %v2174, 7
    %v2176 = vsub.s32 0, %v2175
    %v2177 = vrot.slane %v2172, %v2176
    %v2180 = vsel %vm273, %v2163, 0
    %2182 = vmatprep.subr.mxu0 0.0
    %2183 = vmatpush1.msra.mxu0 0.0
    %2184 = vmatprep.subr.mxu0 0.0
    %2185 = vmatpush1.msra.mxu0 0.0
    %2186 = vmatprep.subr.mxu0 0.0
    %2187 = vmatpush1.msra.mxu0 0.0
    %2188 = vmatprep.subr.mxu0 0.0
    %2189 = vmatpush1.msra.mxu0 0.0
    %2190 = vmatprep.subr.mxu0 0.0
    %2191 = vmatpush1.msra.mxu0 0.0
    %2192 = vmatprep.subr.mxu0 0.0
    %2193 = vmatpush1.msra.mxu0 0.0
    %2194 = vmatprep.subr.mxu0 0.0
    %2195 = vmatpush1.msra.mxu0 0.0
    %2196 = vmatprep.subr.mxu0 0.0
    %2197 = vmatpush1.msra.mxu0 0.0
    %2198 = vmatprep.subr.mxu0 0.0
    %2199 = vmatpush1.msra.mxu0 %v2171
    %2200 = vmatprep.subr.mxu0 0.0
    %2201 = vmatpush1.msra.mxu0 %v2170
    %2202 = vmatprep.subr.mxu0 0.0
    %2203 = vmatpush1.msra.mxu0 %v2169
    %2204 = vmatprep.subr.mxu0 0.0
    %2205 = vmatpush1.msra.mxu0 %v2168
    %2206 = vmatprep.subr.mxu0 0.0
    %2207 = vmatpush1.msra.mxu0 %v2167
    %2208 = vmatprep.subr.mxu0 0.0
    %2209 = vmatpush1.msra.mxu0 %v2166
    %2210 = vmatprep.subr.mxu0 0.0
    %2211 = vmatpush1.msra.mxu0 %v2165
    %2212 = vmatprep.subr.mxu0 0.0
    %2213 = vmatpush1.msra.mxu0 %v2164
    %2214 = vmatprep.subr.mxu0 0.0
    %2215 = vmatpush2.msra.mxu0 0.0
    %2216 = vmatprep.subr.mxu0 0.0
    %2217 = vmatpush2.msra.mxu0 0.0
    %2218 = vmatprep.subr.mxu0 0.0
    %2219 = vmatpush2.msra.mxu0 0.0
    %2220 = vmatprep.subr.mxu0 0.0
    %2221 = vmatpush2.msra.mxu0 0.0
    %2222 = vmatprep.subr.mxu0 0.0
    %2223 = vmatpush2.msra.mxu0 0.0
    %2224 = vmatprep.subr.mxu0 0.0
    %2225 = vmatpush2.msra.mxu0 0.0
    %2226 = vmatprep.subr.mxu0 0.0
    %2227 = vmatpush2.msra.mxu0 0.0
    %2228 = vmatprep.subr.mxu0 0.0
    %2229 = vmatpush2.msra.mxu0 0.0
    %2230 = vmatprep.subr.mxu0 0.0
    %2231 = vmatpush2.msra.mxu0 0.0
    %2232 = vmatprep.subr.mxu0 0.0
    %2233 = vmatpush2.msra.mxu0 0.0
    %2234 = vmatprep.subr.mxu0 0.0
    %2235 = vmatpush2.msra.mxu0 0.0
    %2236 = vmatprep.subr.mxu0 0.0
    %2237 = vmatpush2.msra.mxu0 0.0
    %2238 = vmatprep.subr.mxu0 0.0
    %2239 = vmatpush2.msra.mxu0 0.0
    %2240 = vmatprep.subr.mxu0 0.0
    %2241 = vmatpush2.msra.mxu0 0.0
    %2242 = vmatprep.subr.mxu0 0.0
    %2243 = vmatpush2.msra.mxu0 0.0
    %2244 = vmatprep.subr.mxu0 0.0
    %2245 = vmatpush2.msra.mxu0 0.0
    %2246 = vmatprep.mubr.f32.mxu0 0.0
    %2247 = vmatmul.mubr.f32.gmra.mxu0 %v2180
    %v2248 = vpop.f32.mrf.mxu0
    %v2249 = vadd.f32 %v2177, %v2248
    %v2250 = vpop.f32.mrf.mxu0
    %2251 = vdwg.mxu0
    %2252 = vst [vmem:[#allocation11] sm:$0xff] %v2249
    // Predicated region
    $region54: #{tpu_custom_call.1} parent=1 // pred_check
      _
    $region55: #{tpu_custom_call.1} parent=1 // pred_check_branch
      %2254 = sbr.rel (0) target = $region57
    $region56: #{tpu_custom_call.1} parent=1 // pred_region
      %s2256 = ssub.s32 128, 128
      %2257 = vsyncadd [#allocation5], %s2256
      %s2259 = sshll.u32 [#allocation11], 4
      %s2260 = int_to_ptr.vmem [resolvable:$true] %s2259
      %2262 = dma.vmem_to_hbm [thread:$0]  %s2260, 128, %s9, [#allocation5]
    $region57: #{tpu_custom_call.1} parent=1 // pred_fallthru
      _
    // Predicated region
    $region58: #{tpu_custom_call.1} parent=1 // pred_check
      _
    $region59: #{tpu_custom_call.1} parent=1 // pred_check_branch
      %2264 = sbr.rel (0) target = $region61
    $region60: #{tpu_custom_call.1} parent=1 // pred_region
      %2265 = dma.done [#allocation5], 128
    $region61: #{tpu_custom_call.1} parent=1 // pred_fallthru
      _
    %2266 = vsyncpa [#allocation4], 1
    %2267 = vsyncpa [#allocation7], 1
    %2268 = vsyncpa [#allocation10], 1
    %2269 = vsyncpa [#allocation5], 1

</llo_original>
